<compile_context>
chip_gen: v7x
topology: tpu7x:2x2x1
jax: 0.10.0
libtpu: 0.0.40
codegen_flags: <defaults>
</compile_context>

<pallas_src>
import jax
import jax.numpy as jnp
from jax.experimental import pallas as pl
from jax.experimental.pallas import tpu as pltpu

EPS = 1e-5


def resblock_kernel(x_ref, w1b_ref, w2b_ref, chan_avg_ref,
                    g1_ref, be1_ref, g2_ref, be2_ref,
                    o_ref, pad_ref):
    """Fused ResBlock forward.

    x_ref           : (N*H, W*C)        lane-dense input activations
    w1b_ref/w2b_ref : (3, W*C, W*C)     row-banded conv weights (kw, W halo,
                                        and W all folded in; K = W*C)
    chan_avg_ref    : (W*C, W*C)        0/1 channel selector / (N*H*W)
    g*/be*_ref      : (1, W*C)          BN gamma/beta pre-tiled to lane layout
    o_ref           : (N*H, W*C)        output
    pad_ref         : (N, H+2, W*C)     VMEM scratch: H-padded conv input
    """
    N, Hp, WC = pad_ref.shape
    H = Hp - 2

    # ---- pad scratch: zero only the two H-halo rows, then fill the interior.
    # (W halo lives in the banded weights, so writes are lane-offset-0.)
    pad_ref[:, pl.ds(0, 1), :] = jnp.zeros((N, 1, WC), jnp.float32)
    pad_ref[:, pl.ds(Hp - 1, 1), :] = jnp.zeros((N, 1, WC), jnp.float32)
    pad_ref[:, pl.ds(1, H), :] = x_ref[...].reshape(N, H, WC)

    def conv3x3(wb_ref):
        # 3 MXU matmuls, one per kernel row.  K = W*C (no halo columns).
        acc = jnp.zeros((N * H, WC), jnp.float32)
        for dy in range(3):
            row_slab = pad_ref[:, pl.ds(dy, H), :].reshape(N * H, WC)
            acc = acc + jnp.dot(row_slab, wb_ref[dy],
                                preferred_element_type=jnp.float32)
        return acc

    def bn_affine(acc, g_l, be_l):
        # Training-mode batch stats (biased variance), one pass over acc.
        # Row-sum FIRST (cheap XLU reduce), then fold / re-broadcast channels
        # across the w-groups of the lane dim with a tiny (1,WC)x(WC,WC) matmul.
        col_sum = jnp.sum(acc, axis=0, keepdims=True)                # (1, WC)
        col_sq = jnp.sum(acc * acc, axis=0, keepdims=True)           # (1, WC)
        chan_avg = chan_avg_ref[...]                                 # short-lived
        mean_l = jnp.dot(col_sum, chan_avg,
                         preferred_element_type=jnp.float32)         # (1, WC)
        ex2_l = jnp.dot(col_sq, chan_avg,
                        preferred_element_type=jnp.float32)          # (1, WC)
        var_l = jnp.maximum(ex2_l - mean_l * mean_l, 0.0)
        scale = g_l * jax.lax.rsqrt(var_l + EPS)                     # (1, WC)
        shift = be_l - mean_l * scale                                # (1, WC)
        return scale, shift

    # ---- conv1 -> bn1 -> relu ----
    acc1 = conv3x3(w1b_ref)
    s1, t1 = bn_affine(acc1, g1_ref[...], be1_ref[...])
    h = jnp.maximum(acc1 * s1 + t1, 0.0)                             # (N*H, WC)

    # ---- reuse the pad scratch: overwrite interior only (halo rows stay 0) --
    pad_ref[:, pl.ds(1, H), :] = h.reshape(N, H, WC)

    # ---- conv2 -> bn2 -> residual add -> relu (lane-dense store) ----
    acc2 = conv3x3(w2b_ref)
    s2, t2 = bn_affine(acc2, g2_ref[...], be2_ref[...])
    o_ref[...] = jnp.maximum(x_ref[...] + acc2 * s2 + t2, 0.0)


def _row_banded_weights(w_hwio, width):
    """HWIO (3,3,Cin,Cout) -> (3, W*Cin, W*Cout) row-banded matrices.

    The W halo is absorbed into the band:
      B[dy, p*Cin+ci, w*Cout+co] = w[dy, p-w+1, ci, co] if 0 <= p-w+1 < 3 else 0
    so matmul of the dy-th (unpadded-width) row slab against B[dy] applies the
    kw taps with implicit zero padding at the W edges and yields output already
    laid out as (w, cout) along lanes.
    """
    kh, kw, cin, cout = w_hwio.shape
    p = jnp.arange(width)[:, None]     # input column
    q = jnp.arange(width)[None, :]     # output column
    rows = []
    for dy in range(kh):
        b = jnp.zeros((width, cin, width, cout), jnp.float32)
        for dx in range(kw):
            sel = (p == q + dx - 1).astype(jnp.float32)              # (W, W)
            b = b + sel[:, None, :, None] * w_hwio[dy, dx][None, :, None, :]
        rows.append(b.reshape(width * cin, width * cout))
    return jnp.stack(rows, axis=0)


def resblock_pallas(x_nhwc, params):
    """x_nhwc: (N, H, W, C) f32. Conv biases b1/b2 are accepted but unused:
    they are exactly cancelled by the training-mode BN mean subtraction."""
    N, H, W, C = x_nhwc.shape
    Hp = H + 2
    WC = W * C

    x2d = x_nhwc.reshape(N * H, WC)                                  # lane-dense
    w1b = _row_banded_weights(params["w1"], W)                       # (3, WC, WC)
    w2b = _row_banded_weights(params["w2"], W)
    chan_avg = (jnp.tile(jnp.eye(C, dtype=jnp.float32), (W, W))
                / float(N * H * W))                                  # (WC, WC)
    g1 = jnp.tile(params["g1"].reshape(1, C), (1, W))
    be1 = jnp.tile(params["be1"].reshape(1, C), (1, W))
    g2 = jnp.tile(params["g2"].reshape(1, C), (1, W))
    be2 = jnp.tile(params["be2"].reshape(1, C), (1, W))

    vmem = pltpu.MemorySpace.VMEM
    out2d = pl.pallas_call(
        resblock_kernel,
        out_shape=jax.ShapeDtypeStruct((N * H, WC), jnp.float32),
        in_specs=[pl.BlockSpec(memory_space=vmem)] * 8,
        out_specs=pl.BlockSpec(memory_space=vmem),
        scratch_shapes=[pltpu.VMEM((N, Hp, WC), jnp.float32)],
    )(x2d, w1b, w2b, chan_avg, g1, be1, g2, be2)
    return out2d.reshape(N, H, W, C)


# ------------------- pure-JAX reference (for validation) -------------------
def _conv3x3_ref(x, w, b):
    y = jax.lax.conv_general_dilated(
        x, w, window_strides=(1, 1), padding=((1, 1), (1, 1)),
        dimension_numbers=("NHWC", "HWIO", "NHWC"))
    return y + b.reshape(1, 1, 1, -1)


def _bn_train_ref(x, gamma, beta):
    mean = x.mean(axis=(0, 1, 2), keepdims=True)
    var = ((x - mean) ** 2).mean(axis=(0, 1, 2), keepdims=True)
    return ((x - mean) * jax.lax.rsqrt(var + EPS)
            * gamma.reshape(1, 1, 1, -1) + beta.reshape(1, 1, 1, -1))


def resblock_ref(x, p):
    h = jax.nn.relu(_bn_train_ref(_conv3x3_ref(x, p["w1"], p["b1"]),
                                  p["g1"], p["be1"]))
    h = _bn_train_ref(_conv3x3_ref(h, p["w2"], p["b2"]), p["g2"], p["be2"])
    return jax.nn.relu(x + h)


if __name__ == "__main__":
    N, H, W, C = 2, 16, 16, 8    # W * C = 128 -> fully lane-dense slabs

    key = jax.random.PRNGKey(0)
    k = jax.random.split(key, 6)
    x = jax.random.normal(k[0], (N, H, W, C), jnp.float32)

    params = {
        "w1": 0.1 * jax.random.normal(k[1], (3, 3, C, C), jnp.float32),
        "b1": 0.1 * jax.random.normal(k[2], (1, C), jnp.float32),
        "g1": jnp.ones((1, C), jnp.float32) * 1.1,
        "be1": jnp.full((1, C), 0.05, jnp.float32),
        "w2": 0.1 * jax.random.normal(k[3], (3, 3, C, C), jnp.float32),
        "b2": 0.1 * jax.random.normal(k[4], (1, C), jnp.float32),
        "g2": jnp.ones((1, C), jnp.float32) * 0.9,
        "be2": jnp.full((1, C), -0.05, jnp.float32),
    }

    out = jax.block_until_ready(resblock_pallas(x, params))
    ref = jax.block_until_ready(resblock_ref(x, params))

    assert out.shape == (N, H, W, C)
    assert jnp.allclose(out, ref, rtol=1e-4, atol=1e-4), "mismatch vs reference"
    print("KERNEL_OK")
</pallas_src>

<mosaic_0001>
module attributes {stable_mosaic.version = 11 : i64} {
  func.func @resblock_kernel(%arg0: memref<32x128xf32, #tpu.memory_space<vmem>>, %arg1: memref<3x128x128xf32, #tpu.memory_space<vmem>>, %arg2: memref<3x128x128xf32, #tpu.memory_space<vmem>>, %arg3: memref<128x128xf32, #tpu.memory_space<vmem>>, %arg4: memref<1x128xf32, #tpu.memory_space<vmem>>, %arg5: memref<1x128xf32, #tpu.memory_space<vmem>>, %arg6: memref<1x128xf32, #tpu.memory_space<vmem>>, %arg7: memref<1x128xf32, #tpu.memory_space<vmem>>, %arg8: memref<32x128xf32, #tpu.memory_space<vmem>>, %arg9: memref<2x18x128xf32, #tpu.memory_space<vmem>>) attributes {dimension_semantics = [], scalar_prefetch = 0 : i64, scratch_operands = 1 : i64, tpu.core_type = #tpu.core_type<tc>} {
    %cst = arith.constant 0.000000e+00 : f32
    %0 = vector.broadcast %cst : f32 to vector<2x1x128xf32>
    %c0 = arith.constant 0 : index
    %c0_0 = arith.constant 0 : index
    %c0_1 = arith.constant 0 : index
    %1 = vector.load %arg9[%c0, %c0_0, %c0_1] : memref<2x18x128xf32, #tpu.memory_space<vmem>>, vector<2x1x128xf32>
    tpu.vector_store %arg9[%c0, %c0_0, %c0_1], %0 {strides = array<i32>} : memref<2x18x128xf32, #tpu.memory_space<vmem>>, vector<2x1x128xf32>,
    %cst_2 = arith.constant 0.000000e+00 : f32
    %2 = vector.broadcast %cst_2 : f32 to vector<2x1x128xf32>
    %c0_3 = arith.constant 0 : index
    %c17 = arith.constant 17 : index
    %c0_4 = arith.constant 0 : index
    %3 = vector.load %arg9[%c0_3, %c17, %c0_4] : memref<2x18x128xf32, #tpu.memory_space<vmem>>, vector<2x1x128xf32>
    tpu.vector_store %arg9[%c0_3, %c17, %c0_4], %2 {strides = array<i32>} : memref<2x18x128xf32, #tpu.memory_space<vmem>>, vector<2x1x128xf32>,
    %c0_5 = arith.constant 0 : index
    %c0_6 = arith.constant 0 : index
    %4 = vector.load %arg0[%c0_5, %c0_6] : memref<32x128xf32, #tpu.memory_space<vmem>>, vector<32x128xf32>
    %5 = vector.shape_cast %4 : vector<32x128xf32> to vector<2x16x128xf32>
    %c0_7 = arith.constant 0 : index
    %c1 = arith.constant 1 : index
    %c0_8 = arith.constant 0 : index
    %6 = vector.load %arg9[%c0_7, %c1, %c0_8] : memref<2x18x128xf32, #tpu.memory_space<vmem>>, vector<2x16x128xf32>
    tpu.vector_store %arg9[%c0_7, %c1, %c0_8], %5 {strides = array<i32>} : memref<2x18x128xf32, #tpu.memory_space<vmem>>, vector<2x16x128xf32>,
    %cst_9 = arith.constant 0.000000e+00 : f32
    %7 = vector.broadcast %cst_9 : f32 to vector<32x128xf32>
    %c0_10 = arith.constant 0 : index
    %c0_11 = arith.constant 0 : index
    %c0_12 = arith.constant 0 : index
    %8 = vector.load %arg9[%c0_10, %c0_11, %c0_12] : memref<2x18x128xf32, #tpu.memory_space<vmem>>, vector<2x16x128xf32>
    %9 = vector.shape_cast %8 : vector<2x16x128xf32> to vector<32x128xf32>
    %c0_13 = arith.constant 0 : index
    %c0_14 = arith.constant 0 : index
    %c0_15 = arith.constant 0 : index
    %10 = vector.load %arg1[%c0_13, %c0_14, %c0_15] : memref<3x128x128xf32, #tpu.memory_space<vmem>>, vector<1x128x128xf32>
    %11 = vector.shape_cast %10 : vector<1x128x128xf32> to vector<128x128xf32>
    %cst_16 = arith.constant dense<0.000000e+00> : vector<32x128xf32>
    %12 = tpu.matmul %9, %11, %cst_16 {dimension_numbers = #tpu.dot_dimension_numbers<[1], [0], [0], [1], [0, 0, 1, 1], [], []>} : vector<32x128xf32>, vector<128x128xf32>, vector<32x128xf32> -> vector<32x128xf32>
    %13 = arith.addf %7, %12 : vector<32x128xf32>
    %c0_17 = arith.constant 0 : index
    %c1_18 = arith.constant 1 : index
    %c0_19 = arith.constant 0 : index
    %14 = vector.load %arg9[%c0_17, %c1_18, %c0_19] : memref<2x18x128xf32, #tpu.memory_space<vmem>>, vector<2x16x128xf32>
    %15 = vector.shape_cast %14 : vector<2x16x128xf32> to vector<32x128xf32>
    %c1_20 = arith.constant 1 : index
    %c0_21 = arith.constant 0 : index
    %c0_22 = arith.constant 0 : index
    %16 = vector.load %arg1[%c1_20, %c0_21, %c0_22] : memref<3x128x128xf32, #tpu.memory_space<vmem>>, vector<1x128x128xf32>
    %17 = vector.shape_cast %16 : vector<1x128x128xf32> to vector<128x128xf32>
    %cst_23 = arith.constant dense<0.000000e+00> : vector<32x128xf32>
    %18 = tpu.matmul %15, %17, %cst_23 {dimension_numbers = #tpu.dot_dimension_numbers<[1], [0], [0], [1], [0, 0, 1, 1], [], []>} : vector<32x128xf32>, vector<128x128xf32>, vector<32x128xf32> -> vector<32x128xf32>
    %19 = arith.addf %13, %18 : vector<32x128xf32>
    %c0_24 = arith.constant 0 : index
    %c2 = arith.constant 2 : index
    %c0_25 = arith.constant 0 : index
    %20 = vector.load %arg9[%c0_24, %c2, %c0_25] : memref<2x18x128xf32, #tpu.memory_space<vmem>>, vector<2x16x128xf32>
    %21 = vector.shape_cast %20 : vector<2x16x128xf32> to vector<32x128xf32>
    %c2_26 = arith.constant 2 : index
    %c0_27 = arith.constant 0 : index
    %c0_28 = arith.constant 0 : index
    %22 = vector.load %arg1[%c2_26, %c0_27, %c0_28] : memref<3x128x128xf32, #tpu.memory_space<vmem>>, vector<1x128x128xf32>
    %23 = vector.shape_cast %22 : vector<1x128x128xf32> to vector<128x128xf32>
    %cst_29 = arith.constant dense<0.000000e+00> : vector<32x128xf32>
    %24 = tpu.matmul %21, %23, %cst_29 {dimension_numbers = #tpu.dot_dimension_numbers<[1], [0], [0], [1], [0, 0, 1, 1], [], []>} : vector<32x128xf32>, vector<128x128xf32>, vector<32x128xf32> -> vector<32x128xf32>
    %25 = arith.addf %19, %24 : vector<32x128xf32>
    %c0_30 = arith.constant 0 : index
    %c0_31 = arith.constant 0 : index
    %26 = vector.load %arg4[%c0_30, %c0_31] : memref<1x128xf32, #tpu.memory_space<vmem>>, vector<1x128xf32>
    %c0_32 = arith.constant 0 : index
    %c0_33 = arith.constant 0 : index
    %27 = vector.load %arg5[%c0_32, %c0_33] : memref<1x128xf32, #tpu.memory_space<vmem>>, vector<1x128xf32>
    %cst_34 = arith.constant dense<0.000000e+00> : vector<128xf32>
    %28 = vector.multi_reduction <add>, %25, %cst_34 [0] : vector<32x128xf32> to vector<128xf32>
    %29 = vector.shape_cast %28 : vector<128xf32> to vector<1x128xf32>
    %30 = arith.mulf %25, %25 : vector<32x128xf32>
    %cst_35 = arith.constant dense<0.000000e+00> : vector<128xf32>
    %31 = vector.multi_reduction <add>, %30, %cst_35 [0] : vector<32x128xf32> to vector<128xf32>
    %32 = vector.shape_cast %31 : vector<128xf32> to vector<1x128xf32>
    %c0_36 = arith.constant 0 : index
    %c0_37 = arith.constant 0 : index
    %33 = vector.load %arg3[%c0_36, %c0_37] : memref<128x128xf32, #tpu.memory_space<vmem>>, vector<128x128xf32>
    %cst_38 = arith.constant dense<0.000000e+00> : vector<1x128xf32>
    %34 = tpu.matmul %29, %33, %cst_38 {dimension_numbers = #tpu.dot_dimension_numbers<[1], [0], [0], [1], [0, 0, 1, 1], [], []>} : vector<1x128xf32>, vector<128x128xf32>, vector<1x128xf32> -> vector<1x128xf32>
    %cst_39 = arith.constant dense<0.000000e+00> : vector<1x128xf32>
    %35 = tpu.matmul %32, %33, %cst_39 {dimension_numbers = #tpu.dot_dimension_numbers<[1], [0], [0], [1], [0, 0, 1, 1], [], []>} : vector<1x128xf32>, vector<128x128xf32>, vector<1x128xf32> -> vector<1x128xf32>
    %36 = arith.mulf %34, %34 : vector<1x128xf32>
    %37 = arith.subf %35, %36 : vector<1x128xf32>
    %cst_40 = arith.constant 0.000000e+00 : f32
    %38 = vector.broadcast %cst_40 : f32 to vector<1x128xf32>
    %39 = arith.maximumf %37, %38 : vector<1x128xf32>
    %cst_41 = arith.constant 9.99999974E-6 : f32
    %40 = vector.broadcast %cst_41 : f32 to vector<1x128xf32>
    %41 = arith.addf %39, %40 : vector<1x128xf32>
    %42 = math.rsqrt %41 : vector<1x128xf32>
    %43 = arith.mulf %26, %42 : vector<1x128xf32>
    %44 = arith.mulf %34, %43 : vector<1x128xf32>
    %45 = arith.subf %27, %44 : vector<1x128xf32>
    %46 = vector.broadcast %43 : vector<1x128xf32> to vector<32x128xf32>
    %47 = arith.mulf %25, %46 : vector<32x128xf32>
    %48 = vector.broadcast %45 : vector<1x128xf32> to vector<32x128xf32>
    %49 = arith.addf %47, %48 : vector<32x128xf32>
    %cst_42 = arith.constant 0.000000e+00 : f32
    %50 = vector.broadcast %cst_42 : f32 to vector<32x128xf32>
    %51 = arith.maximumf %49, %50 : vector<32x128xf32>
    %52 = vector.shape_cast %51 : vector<32x128xf32> to vector<2x16x128xf32>
    %c0_43 = arith.constant 0 : index
    %c1_44 = arith.constant 1 : index
    %c0_45 = arith.constant 0 : index
    %53 = vector.load %arg9[%c0_43, %c1_44, %c0_45] : memref<2x18x128xf32, #tpu.memory_space<vmem>>, vector<2x16x128xf32>
    tpu.vector_store %arg9[%c0_43, %c1_44, %c0_45], %52 {strides = array<i32>} : memref<2x18x128xf32, #tpu.memory_space<vmem>>, vector<2x16x128xf32>,
    %cst_46 = arith.constant 0.000000e+00 : f32
    %54 = vector.broadcast %cst_46 : f32 to vector<32x128xf32>
    %c0_47 = arith.constant 0 : index
    %c0_48 = arith.constant 0 : index
    %c0_49 = arith.constant 0 : index
    %55 = vector.load %arg9[%c0_47, %c0_48, %c0_49] : memref<2x18x128xf32, #tpu.memory_space<vmem>>, vector<2x16x128xf32>
    %56 = vector.shape_cast %55 : vector<2x16x128xf32> to vector<32x128xf32>
    %c0_50 = arith.constant 0 : index
    %c0_51 = arith.constant 0 : index
    %c0_52 = arith.constant 0 : index
    %57 = vector.load %arg2[%c0_50, %c0_51, %c0_52] : memref<3x128x128xf32, #tpu.memory_space<vmem>>, vector<1x128x128xf32>
    %58 = vector.shape_cast %57 : vector<1x128x128xf32> to vector<128x128xf32>
    %cst_53 = arith.constant dense<0.000000e+00> : vector<32x128xf32>
    %59 = tpu.matmul %56, %58, %cst_53 {dimension_numbers = #tpu.dot_dimension_numbers<[1], [0], [0], [1], [0, 0, 1, 1], [], []>} : vector<32x128xf32>, vector<128x128xf32>, vector<32x128xf32> -> vector<32x128xf32>
    %60 = arith.addf %54, %59 : vector<32x128xf32>
    %c0_54 = arith.constant 0 : index
    %c1_55 = arith.constant 1 : index
    %c0_56 = arith.constant 0 : index
    %61 = vector.load %arg9[%c0_54, %c1_55, %c0_56] : memref<2x18x128xf32, #tpu.memory_space<vmem>>, vector<2x16x128xf32>
    %62 = vector.shape_cast %61 : vector<2x16x128xf32> to vector<32x128xf32>
    %c1_57 = arith.constant 1 : index
    %c0_58 = arith.constant 0 : index
    %c0_59 = arith.constant 0 : index
    %63 = vector.load %arg2[%c1_57, %c0_58, %c0_59] : memref<3x128x128xf32, #tpu.memory_space<vmem>>, vector<1x128x128xf32>
    %64 = vector.shape_cast %63 : vector<1x128x128xf32> to vector<128x128xf32>
    %cst_60 = arith.constant dense<0.000000e+00> : vector<32x128xf32>
    %65 = tpu.matmul %62, %64, %cst_60 {dimension_numbers = #tpu.dot_dimension_numbers<[1], [0], [0], [1], [0, 0, 1, 1], [], []>} : vector<32x128xf32>, vector<128x128xf32>, vector<32x128xf32> -> vector<32x128xf32>
    %66 = arith.addf %60, %65 : vector<32x128xf32>
    %c0_61 = arith.constant 0 : index
    %c2_62 = arith.constant 2 : index
    %c0_63 = arith.constant 0 : index
    %67 = vector.load %arg9[%c0_61, %c2_62, %c0_63] : memref<2x18x128xf32, #tpu.memory_space<vmem>>, vector<2x16x128xf32>
    %68 = vector.shape_cast %67 : vector<2x16x128xf32> to vector<32x128xf32>
    %c2_64 = arith.constant 2 : index
    %c0_65 = arith.constant 0 : index
    %c0_66 = arith.constant 0 : index
    %69 = vector.load %arg2[%c2_64, %c0_65, %c0_66] : memref<3x128x128xf32, #tpu.memory_space<vmem>>, vector<1x128x128xf32>
    %70 = vector.shape_cast %69 : vector<1x128x128xf32> to vector<128x128xf32>
    %cst_67 = arith.constant dense<0.000000e+00> : vector<32x128xf32>
    %71 = tpu.matmul %68, %70, %cst_67 {dimension_numbers = #tpu.dot_dimension_numbers<[1], [0], [0], [1], [0, 0, 1, 1], [], []>} : vector<32x128xf32>, vector<128x128xf32>, vector<32x128xf32> -> vector<32x128xf32>
    %72 = arith.addf %66, %71 : vector<32x128xf32>
    %c0_68 = arith.constant 0 : index
    %c0_69 = arith.constant 0 : index
    %73 = vector.load %arg6[%c0_68, %c0_69] : memref<1x128xf32, #tpu.memory_space<vmem>>, vector<1x128xf32>
    %c0_70 = arith.constant 0 : index
    %c0_71 = arith.constant 0 : index
    %74 = vector.load %arg7[%c0_70, %c0_71] : memref<1x128xf32, #tpu.memory_space<vmem>>, vector<1x128xf32>
    %cst_72 = arith.constant dense<0.000000e+00> : vector<128xf32>
    %75 = vector.multi_reduction <add>, %72, %cst_72 [0] : vector<32x128xf32> to vector<128xf32>
    %76 = vector.shape_cast %75 : vector<128xf32> to vector<1x128xf32>
    %77 = arith.mulf %72, %72 : vector<32x128xf32>
    %cst_73 = arith.constant dense<0.000000e+00> : vector<128xf32>
    %78 = vector.multi_reduction <add>, %77, %cst_73 [0] : vector<32x128xf32> to vector<128xf32>
    %79 = vector.shape_cast %78 : vector<128xf32> to vector<1x128xf32>
    %c0_74 = arith.constant 0 : index
    %c0_75 = arith.constant 0 : index
    %80 = vector.load %arg3[%c0_74, %c0_75] : memref<128x128xf32, #tpu.memory_space<vmem>>, vector<128x128xf32>
    %cst_76 = arith.constant dense<0.000000e+00> : vector<1x128xf32>
    %81 = tpu.matmul %76, %80, %cst_76 {dimension_numbers = #tpu.dot_dimension_numbers<[1], [0], [0], [1], [0, 0, 1, 1], [], []>} : vector<1x128xf32>, vector<128x128xf32>, vector<1x128xf32> -> vector<1x128xf32>
    %cst_77 = arith.constant dense<0.000000e+00> : vector<1x128xf32>
    %82 = tpu.matmul %79, %80, %cst_77 {dimension_numbers = #tpu.dot_dimension_numbers<[1], [0], [0], [1], [0, 0, 1, 1], [], []>} : vector<1x128xf32>, vector<128x128xf32>, vector<1x128xf32> -> vector<1x128xf32>
    %83 = arith.mulf %81, %81 : vector<1x128xf32>
    %84 = arith.subf %82, %83 : vector<1x128xf32>
    %cst_78 = arith.constant 0.000000e+00 : f32
    %85 = vector.broadcast %cst_78 : f32 to vector<1x128xf32>
    %86 = arith.maximumf %84, %85 : vector<1x128xf32>
    %cst_79 = arith.constant 9.99999974E-6 : f32
    %87 = vector.broadcast %cst_79 : f32 to vector<1x128xf32>
    %88 = arith.addf %86, %87 : vector<1x128xf32>
    %89 = math.rsqrt %88 : vector<1x128xf32>
    %90 = arith.mulf %73, %89 : vector<1x128xf32>
    %91 = arith.mulf %81, %90 : vector<1x128xf32>
    %92 = arith.subf %74, %91 : vector<1x128xf32>
    %c0_80 = arith.constant 0 : index
    %c0_81 = arith.constant 0 : index
    %93 = vector.load %arg0[%c0_80, %c0_81] : memref<32x128xf32, #tpu.memory_space<vmem>>, vector<32x128xf32>
    %94 = vector.broadcast %90 : vector<1x128xf32> to vector<32x128xf32>
    %95 = arith.mulf %72, %94 : vector<32x128xf32>
    %96 = arith.addf %93, %95 : vector<32x128xf32>
    %97 = vector.broadcast %92 : vector<1x128xf32> to vector<32x128xf32>
    %98 = arith.addf %96, %97 : vector<32x128xf32>
    %cst_82 = arith.constant 0.000000e+00 : f32
    %99 = vector.broadcast %cst_82 : f32 to vector<32x128xf32>
    %100 = arith.maximumf %98, %99 : vector<32x128xf32>
    %c0_83 = arith.constant 0 : index
    %c0_84 = arith.constant 0 : index
    %101 = vector.load %arg8[%c0_83, %c0_84] : memref<32x128xf32, #tpu.memory_space<vmem>>, vector<32x128xf32>
    tpu.vector_store %arg8[%c0_83, %c0_84], %100 {strides = array<i32>} : memref<32x128xf32, #tpu.memory_space<vmem>>, vector<32x128xf32>,
    return
  }
}

</mosaic_0001>

<llo_original>
// kernel: tpu_custom_call.1
$region0: #{tpu_custom_call.1}
  #allocation0 [shape = 'u32[]', space=smem, size = 0x4, offset = 0x4, fixed_abs, tag = 'smem constant byte address 0x4 - core index']
  #allocation1 [shape = 'u32[144,128]{1,0:T(1,128)}', space=vmem, size = 0x12000, scoped, tag = 'internal scratch']
  #allocation2 [shape = 'f32[2,18,128]{2,1,0:T(8,128)}', space=vmem, size = 0x6000, scoped, tag = 'scratch operand']
  %s0 = inlined_call_operand.hbm [shape: f32[32,128], index: 0, kind: input, shape index: {}]
  %s1 = inlined_call_operand.hbm [shape: f32[3,128,128], index: 1, kind: input, shape index: {}]
  %s2 = inlined_call_operand.hbm [shape: f32[3,128,128], index: 2, kind: input, shape index: {}]
  %s3 = inlined_call_operand.hbm [shape: f32[128,128], index: 3, kind: input, shape index: {}]
  %s4 = inlined_call_operand.vmem [shape: f32[1,128], index: 4, kind: input, shape index: {}]
  %s5 = inlined_call_operand.vmem [shape: f32[1,128], index: 5, kind: input, shape index: {}]
  %s6 = inlined_call_operand.vmem [shape: f32[1,128], index: 6, kind: input, shape index: {}]
  %s7 = inlined_call_operand.vmem [shape: f32[1,128], index: 7, kind: input, shape index: {}]
  %s8 = inlined_call_operand.hbm [shape: f32[32,128], index: 8, kind: output, shape index: {}]
  %s9 = sld [smem:[#allocation0]]
  $region58: #{tpu_custom_call.1} parent=0
    _
  %s11 = ssub.s32 1, %s9
  %s12 = scalar_select 0, %s11, %s9
  $region1: #{tpu_custom_call.1} parent=0
    #allocation3 [shape = 'u8[16384]{0}', space=vmem, size = 0x4000, scoped, tag = 'input window, operand 0, single buffered']
    #allocation4 [shape = 's32[1]{0}', space=sflag, size = 0x4, scoped, tag = 'scoped memory for tpu_custom_call.1']
    #allocation5 [shape = 's32[1]{0}', space=sflag, size = 0x4, scoped, tag = 'scoped memory for tpu_custom_call.1']
    #allocation6 [shape = 'u8[196608]{0}', space=vmem, size = 0x30000, scoped, tag = 'input window, operand 1, single buffered']
    #allocation7 [shape = 's32[1]{0}', space=sflag, size = 0x4, scoped, tag = 'scoped memory for tpu_custom_call.1']
    #allocation8 [shape = 'u8[196608]{0}', space=vmem, size = 0x30000, scoped, tag = 'input window, operand 2, single buffered']
    #allocation9 [shape = 'u8[65536]{0}', space=vmem, size = 0x10000, scoped, tag = 'input window, operand 3, single buffered']
    #allocation10 [shape = 's32[1]{0}', space=sflag, size = 0x4, scoped, tag = 'scoped memory for tpu_custom_call.1']
    #allocation11 [shape = 'u8[16384]{0}', space=vmem, size = 0x4000, scoped, tag = 'output window, operand 0, single buffered']
    %13 = vsyncpa [#allocation4], 0
    %14 = vsyncpa [#allocation7], 0
    %15 = vsyncpa [#allocation10], 0
    %16 = vsyncpa [#allocation5], 0
    // Predicated region
    $region2: #{tpu_custom_call.1} parent=1 // pred_check
      _
    $region3: #{tpu_custom_call.1} parent=1 // pred_check_branch
      %18 = sbr.rel (0) target = $region5
    $region4: #{tpu_custom_call.1} parent=1 // pred_region
      %s20 = ssub.s32 512, 512
      %21 = vsyncadd [#allocation4], %s20
      %s22 = sshll.u32 [#allocation3], 4
      %s23 = int_to_ptr.vmem [resolvable:$true] %s22
      %28 = dma.hbm_to_vmem [thread:$0]  %s0, 512, %s23, [#allocation4], 128, 128, 8
    $region5: #{tpu_custom_call.1} parent=1 // pred_fallthru
      _
    // Predicated region
    $region6: #{tpu_custom_call.1} parent=1 // pred_check
      _
    $region7: #{tpu_custom_call.1} parent=1 // pred_check_branch
      %30 = sbr.rel (0) target = $region9
    $region8: #{tpu_custom_call.1} parent=1 // pred_region
      %s32 = ssub.s32 6144, 6144
      %33 = vsyncadd [#allocation7], %s32
      %s34 = sshll.u32 [#allocation6], 4
      %s35 = int_to_ptr.vmem [resolvable:$true] %s34
      %40 = dma.hbm_to_vmem [thread:$0]  %s1, 6144, %s35, [#allocation7], 128, 128, 8
    $region9: #{tpu_custom_call.1} parent=1 // pred_fallthru
      _
    // Predicated region
    $region10: #{tpu_custom_call.1} parent=1 // pred_check
      _
    $region11: #{tpu_custom_call.1} parent=1 // pred_check_branch
      %42 = sbr.rel (0) target = $region13
    $region12: #{tpu_custom_call.1} parent=1 // pred_region
      %s44 = ssub.s32 6144, 6144
      %45 = vsyncadd [#allocation7], %s44
      %s46 = sshll.u32 [#allocation8], 4
      %s47 = int_to_ptr.vmem [resolvable:$true] %s46
      %52 = dma.hbm_to_vmem [thread:$0]  %s2, 6144, %s47, [#allocation7], 128, 128, 8
    $region13: #{tpu_custom_call.1} parent=1 // pred_fallthru
      _
    // Predicated region
    $region14: #{tpu_custom_call.1} parent=1 // pred_check
      _
    $region15: #{tpu_custom_call.1} parent=1 // pred_check_branch
      %54 = sbr.rel (0) target = $region17
    $region16: #{tpu_custom_call.1} parent=1 // pred_region
      %s56 = ssub.s32 2048, 2048
      %57 = vsyncadd [#allocation10], %s56
      %s58 = sshll.u32 [#allocation9], 4
      %s59 = int_to_ptr.vmem [resolvable:$true] %s58
      %64 = dma.hbm_to_vmem [thread:$0]  %s3, 2048, %s59, [#allocation10], 128, 128, 8
    $region17: #{tpu_custom_call.1} parent=1 // pred_fallthru
      _
    // Predicated region
    $region18: #{tpu_custom_call.1} parent=1 // pred_check
      _
    $region19: #{tpu_custom_call.1} parent=1 // pred_check_branch
      %66 = sbr.rel (0) target = $region21
    $region20: #{tpu_custom_call.1} parent=1 // pred_region
      _
    $region21: #{tpu_custom_call.1} parent=1 // pred_fallthru
      _
    // Predicated region
    $region22: #{tpu_custom_call.1} parent=1 // pred_check
      _
    $region23: #{tpu_custom_call.1} parent=1 // pred_check_branch
      %68 = sbr.rel (0) target = $region25
    $region24: #{tpu_custom_call.1} parent=1 // pred_region
      _
    $region25: #{tpu_custom_call.1} parent=1 // pred_fallthru
      _
    // Predicated region
    $region26: #{tpu_custom_call.1} parent=1 // pred_check
      _
    $region27: #{tpu_custom_call.1} parent=1 // pred_check_branch
      %70 = sbr.rel (0) target = $region29
    $region28: #{tpu_custom_call.1} parent=1 // pred_region
      _
    $region29: #{tpu_custom_call.1} parent=1 // pred_fallthru
      _
    // Predicated region
    $region30: #{tpu_custom_call.1} parent=1 // pred_check
      _
    $region31: #{tpu_custom_call.1} parent=1 // pred_check_branch
      %72 = sbr.rel (0) target = $region33
    $region32: #{tpu_custom_call.1} parent=1 // pred_region
      _
    $region33: #{tpu_custom_call.1} parent=1 // pred_fallthru
      _
    // Predicated region
    $region34: #{tpu_custom_call.1} parent=1 // pred_check
      _
    $region35: #{tpu_custom_call.1} parent=1 // pred_check_branch
      %74 = sbr.rel (0) target = $region37
    $region36: #{tpu_custom_call.1} parent=1 // pred_region
      %75 = dma.done [#allocation4], 512
    $region37: #{tpu_custom_call.1} parent=1 // pred_fallthru
      _
    // Predicated region
    $region38: #{tpu_custom_call.1} parent=1 // pred_check
      _
    $region39: #{tpu_custom_call.1} parent=1 // pred_check_branch
      %77 = sbr.rel (0) target = $region41
    $region40: #{tpu_custom_call.1} parent=1 // pred_region
      %78 = dma.done [#allocation7], 6144
    $region41: #{tpu_custom_call.1} parent=1 // pred_fallthru
      _
    // Predicated region
    $region42: #{tpu_custom_call.1} parent=1 // pred_check
      _
    $region43: #{tpu_custom_call.1} parent=1 // pred_check_branch
      %80 = sbr.rel (0) target = $region45
    $region44: #{tpu_custom_call.1} parent=1 // pred_region
      %81 = dma.done [#allocation7], 6144
    $region45: #{tpu_custom_call.1} parent=1 // pred_fallthru
      _
    // Predicated region
    $region46: #{tpu_custom_call.1} parent=1 // pred_check
      _
    $region47: #{tpu_custom_call.1} parent=1 // pred_check_branch
      %83 = sbr.rel (0) target = $region49
    $region48: #{tpu_custom_call.1} parent=1 // pred_region
      %84 = dma.done [#allocation10], 2048
    $region49: #{tpu_custom_call.1} parent=1 // pred_fallthru
      _
    %85 = vst [vmem:[#allocation2] sm:$0x1] 0.0
    %86 = vst [vmem:[#allocation2 + $0x18] sm:$0x1] 0.0
    %87 = vst [vmem:[#allocation2 + $0x11] sm:$0x1] 0.0
    %88 = vst [vmem:[#allocation2 + $0x29] sm:$0x1] 0.0
    %v89 = vld [vmem:[#allocation3] sm:$0xff]
    %v90 = vld [vmem:[#allocation3 + $0x8] sm:$0xff]
    %v91 = vld [vmem:[#allocation3 + $0x10] sm:$0xff]
    %v92 = vld [vmem:[#allocation3 + $0x18] sm:$0xff]
    %93 = vst [vmem:[#allocation2 + $0x1] sm:$0xff] %v89
    %94 = vst [vmem:[#allocation2 + $0x9] sm:$0xff] %v90
    %95 = vst [vmem:[#allocation2 + $0x19] sm:$0xff] %v91
    %96 = vst [vmem:[#allocation2 + $0x21] sm:$0xff] %v92
    %v97 = vld [vmem:[#allocation2] sm:$0xff]
    %v98 = vld [vmem:[#allocation2 + $0x8] sm:$0xff]
    %v99 = vld [vmem:[#allocation2 + $0x18] sm:$0xff]
    %v100 = vld [vmem:[#allocation2 + $0x20] sm:$0xff]
    %v101 = vld [vmem:[#allocation6] sm:$0xff]
    %v102 = vld [vmem:[#allocation6 + $0x8] sm:$0xff]
    %v103 = vld [vmem:[#allocation6 + $0x10] sm:$0xff]
    %v104 = vld [vmem:[#allocation6 + $0x18] sm:$0xff]
    %v105 = vld [vmem:[#allocation6 + $0x20] sm:$0xff]
    %v106 = vld [vmem:[#allocation6 + $0x28] sm:$0xff]
    %v107 = vld [vmem:[#allocation6 + $0x30] sm:$0xff]
    %v108 = vld [vmem:[#allocation6 + $0x38] sm:$0xff]
    %v109 = vld [vmem:[#allocation6 + $0x40] sm:$0xff]
    %v110 = vld [vmem:[#allocation6 + $0x48] sm:$0xff]
    %v111 = vld [vmem:[#allocation6 + $0x50] sm:$0xff]
    %v112 = vld [vmem:[#allocation6 + $0x58] sm:$0xff]
    %v113 = vld [vmem:[#allocation6 + $0x60] sm:$0xff]
    %v114 = vld [vmem:[#allocation6 + $0x68] sm:$0xff]
    %v115 = vld [vmem:[#allocation6 + $0x70] sm:$0xff]
    %v116 = vld [vmem:[#allocation6 + $0x78] sm:$0xff]
    %v117 = vld [vmem:[#allocation2 + $0x1] sm:$0xff]
    %v118 = vld [vmem:[#allocation2 + $0x9] sm:$0xff]
    %v119 = vld [vmem:[#allocation2 + $0x19] sm:$0xff]
    %v120 = vld [vmem:[#allocation2 + $0x21] sm:$0xff]
    %s121 = scalar_lea.vmem [#allocation6], 128
    %v122 = vld [vmem:[%s121] sm:$0xff]
    %v123 = vld [vmem:[%s121 + $0x8] sm:$0xff]
    %v124 = vld [vmem:[%s121 + $0x10] sm:$0xff]
    %v125 = vld [vmem:[%s121 + $0x18] sm:$0xff]
    %v126 = vld [vmem:[%s121 + $0x20] sm:$0xff]
    %v127 = vld [vmem:[%s121 + $0x28] sm:$0xff]
    %v128 = vld [vmem:[%s121 + $0x30] sm:$0xff]
    %v129 = vld [vmem:[%s121 + $0x38] sm:$0xff]
    %v130 = vld [vmem:[%s121 + $0x40] sm:$0xff]
    %v131 = vld [vmem:[%s121 + $0x48] sm:$0xff]
    %v132 = vld [vmem:[%s121 + $0x50] sm:$0xff]
    %v133 = vld [vmem:[%s121 + $0x58] sm:$0xff]
    %v134 = vld [vmem:[%s121 + $0x60] sm:$0xff]
    %v135 = vld [vmem:[%s121 + $0x68] sm:$0xff]
    %v136 = vld [vmem:[%s121 + $0x70] sm:$0xff]
    %v137 = vld [vmem:[%s121 + $0x78] sm:$0xff]
    %138 = vmatprep.subr.mxu0 0.0
    %139 = vmatpush1.msra.mxu0 %v122
    %140 = vmatprep.subr.mxu0 0.0
    %141 = vmatpush1.msra.mxu0 %v123
    %142 = vmatprep.subr.mxu0 0.0
    %143 = vmatpush1.msra.mxu0 %v124
    %144 = vmatprep.subr.mxu0 0.0
    %145 = vmatpush1.msra.mxu0 %v125
    %146 = vmatprep.subr.mxu0 0.0
    %147 = vmatpush1.msra.mxu0 %v126
    %148 = vmatprep.subr.mxu0 0.0
    %149 = vmatpush1.msra.mxu0 %v127
    %150 = vmatprep.subr.mxu0 0.0
    %151 = vmatpush1.msra.mxu0 %v128
    %152 = vmatprep.subr.mxu0 0.0
    %153 = vmatpush1.msra.mxu0 %v129
    %154 = vmatprep.subr.mxu0 0.0
    %155 = vmatpush1.msra.mxu0 %v130
    %156 = vmatprep.subr.mxu0 0.0
    %157 = vmatpush1.msra.mxu0 %v131
    %158 = vmatprep.subr.mxu0 0.0
    %159 = vmatpush1.msra.mxu0 %v132
    %160 = vmatprep.subr.mxu0 0.0
    %161 = vmatpush1.msra.mxu0 %v133
    %162 = vmatprep.subr.mxu0 0.0
    %163 = vmatpush1.msra.mxu0 %v134
    %164 = vmatprep.subr.mxu0 0.0
    %165 = vmatpush1.msra.mxu0 %v135
    %166 = vmatprep.subr.mxu0 0.0
    %167 = vmatpush1.msra.mxu0 %v136
    %168 = vmatprep.subr.mxu0 0.0
    %169 = vmatpush1.msra.mxu0 %v137
    %170 = vmatprep.subr.mxu0 0.0
    %171 = vmatpush1.msra.mxu0 0.0
    %172 = vmatprep.subr.mxu0 0.0
    %173 = vmatpush1.msra.mxu0 0.0
    %174 = vmatprep.subr.mxu0 0.0
    %175 = vmatpush1.msra.mxu0 0.0
    %176 = vmatprep.subr.mxu0 0.0
    %177 = vmatpush1.msra.mxu0 0.0
    %178 = vmatprep.subr.mxu0 0.0
    %179 = vmatpush1.msra.mxu0 0.0
    %180 = vmatprep.subr.mxu0 0.0
    %181 = vmatpush1.msra.mxu0 0.0
    %182 = vmatprep.subr.mxu0 0.0
    %183 = vmatpush1.msra.mxu0 0.0
    %184 = vmatprep.subr.mxu0 0.0
    %185 = vmatpush1.msra.mxu0 0.0
    %186 = vmatprep.subr.mxu0 0.0
    %187 = vmatpush1.msra.mxu0 0.0
    %188 = vmatprep.subr.mxu0 0.0
    %189 = vmatpush1.msra.mxu0 0.0
    %190 = vmatprep.subr.mxu0 0.0
    %191 = vmatpush1.msra.mxu0 0.0
    %192 = vmatprep.subr.mxu0 0.0
    %193 = vmatpush1.msra.mxu0 0.0
    %194 = vmatprep.subr.mxu0 0.0
    %195 = vmatpush1.msra.mxu0 0.0
    %196 = vmatprep.subr.mxu0 0.0
    %197 = vmatpush1.msra.mxu0 0.0
    %198 = vmatprep.subr.mxu0 0.0
    %199 = vmatpush1.msra.mxu0 0.0
    %200 = vmatprep.subr.mxu0 0.0
    %201 = vmatpush1.msra.mxu0 0.0
    %202 = vmatprep.mubr.f32.mxu0 0.0
    %203 = vmatmul.mubr.f32.gmra.mrb[0].mxu0 %v117
    %v204 = vpop.f32.mrb[0].mxu0
    %v205 = vadd.f32 0.0, %v204
    %v206 = vpop.f32.mrb[0].mxu0
    %207 = vmatprep.mubr.f32.mxu0 0.0
    %208 = vmatmul.mubr.f32.gmra.mrb[0].mxu0 %v118
    %v209 = vpop.f32.mrb[0].mxu0
    %v210 = vadd.f32 0.0, %v209
    %v211 = vpop.f32.mrb[0].mxu0
    %212 = vmatprep.mubr.f32.mxu0 0.0
    %213 = vmatmul.mubr.f32.gmra.mrb[0].mxu0 %v119
    %v214 = vpop.f32.mrb[0].mxu0
    %v215 = vadd.f32 0.0, %v214
    %v216 = vpop.f32.mrb[0].mxu0
    %217 = vmatprep.mubr.f32.mxu0 0.0
    %218 = vmatmul.mubr.f32.gmra.mrb[0].mxu0 %v120
    %v219 = vpop.f32.mrb[0].mxu0
    %v220 = vadd.f32 0.0, %v219
    %v221 = vpop.f32.mrb[0].mxu0
    %222 = vdwg.mxu0
    %223 = vmatprep.subr.mxu0 0.0
    %224 = vmatpush1.msra.mxu0 %v101
    %225 = vmatprep.subr.mxu0 0.0
    %226 = vmatpush1.msra.mxu0 %v102
    %227 = vmatprep.subr.mxu0 0.0
    %228 = vmatpush1.msra.mxu0 %v103
    %229 = vmatprep.subr.mxu0 0.0
    %230 = vmatpush1.msra.mxu0 %v104
    %231 = vmatprep.subr.mxu0 0.0
    %232 = vmatpush1.msra.mxu0 %v105
    %233 = vmatprep.subr.mxu0 0.0
    %234 = vmatpush1.msra.mxu0 %v106
    %235 = vmatprep.subr.mxu0 0.0
    %236 = vmatpush1.msra.mxu0 %v107
    %237 = vmatprep.subr.mxu0 0.0
    %238 = vmatpush1.msra.mxu0 %v108
    %239 = vmatprep.subr.mxu0 0.0
    %240 = vmatpush1.msra.mxu0 %v109
    %241 = vmatprep.subr.mxu0 0.0
    %242 = vmatpush1.msra.mxu0 %v110
    %243 = vmatprep.subr.mxu0 0.0
    %244 = vmatpush1.msra.mxu0 %v111
    %245 = vmatprep.subr.mxu0 0.0
    %246 = vmatpush1.msra.mxu0 %v112
    %247 = vmatprep.subr.mxu0 0.0
    %248 = vmatpush1.msra.mxu0 %v113
    %249 = vmatprep.subr.mxu0 0.0
    %250 = vmatpush1.msra.mxu0 %v114
    %251 = vmatprep.subr.mxu0 0.0
    %252 = vmatpush1.msra.mxu0 %v115
    %253 = vmatprep.subr.mxu0 0.0
    %254 = vmatpush1.msra.mxu0 %v116
    %255 = vmatprep.subr.mxu0 0.0
    %256 = vmatpush1.msra.mxu0 0.0
    %257 = vmatprep.subr.mxu0 0.0
    %258 = vmatpush1.msra.mxu0 0.0
    %259 = vmatprep.subr.mxu0 0.0
    %260 = vmatpush1.msra.mxu0 0.0
    %261 = vmatprep.subr.mxu0 0.0
    %262 = vmatpush1.msra.mxu0 0.0
    %263 = vmatprep.subr.mxu0 0.0
    %264 = vmatpush1.msra.mxu0 0.0
    %265 = vmatprep.subr.mxu0 0.0
    %266 = vmatpush1.msra.mxu0 0.0
    %267 = vmatprep.subr.mxu0 0.0
    %268 = vmatpush1.msra.mxu0 0.0
    %269 = vmatprep.subr.mxu0 0.0
    %270 = vmatpush1.msra.mxu0 0.0
    %271 = vmatprep.subr.mxu0 0.0
    %272 = vmatpush1.msra.mxu0 0.0
    %273 = vmatprep.subr.mxu0 0.0
    %274 = vmatpush1.msra.mxu0 0.0
    %275 = vmatprep.subr.mxu0 0.0
    %276 = vmatpush1.msra.mxu0 0.0
    %277 = vmatprep.subr.mxu0 0.0
    %278 = vmatpush1.msra.mxu0 0.0
    %279 = vmatprep.subr.mxu0 0.0
    %280 = vmatpush1.msra.mxu0 0.0
    %281 = vmatprep.subr.mxu0 0.0
    %282 = vmatpush1.msra.mxu0 0.0
    %283 = vmatprep.subr.mxu0 0.0
    %284 = vmatpush1.msra.mxu0 0.0
    %285 = vmatprep.subr.mxu0 0.0
    %286 = vmatpush1.msra.mxu0 0.0
    %287 = vmatprep.mubr.f32.mxu0 0.0
    %288 = vmatmul.mubr.f32.gmra.mrb[0].mxu0 %v97
    %v289 = vpop.f32.mrb[0].mxu0
    %v290 = vadd.f32 %v205, %v289
    %v291 = vpop.f32.mrb[0].mxu0
    %292 = vmatprep.mubr.f32.mxu0 0.0
    %293 = vmatmul.mubr.f32.gmra.mrb[0].mxu0 %v98
    %v294 = vpop.f32.mrb[0].mxu0
    %v295 = vadd.f32 %v210, %v294
    %v296 = vpop.f32.mrb[0].mxu0
    %297 = vmatprep.mubr.f32.mxu0 0.0
    %298 = vmatmul.mubr.f32.gmra.mrb[0].mxu0 %v99
    %v299 = vpop.f32.mrb[0].mxu0
    %v300 = vadd.f32 %v215, %v299
    %v301 = vpop.f32.mrb[0].mxu0
    %302 = vmatprep.mubr.f32.mxu0 0.0
    %303 = vmatmul.mubr.f32.gmra.mrb[0].mxu0 %v100
    %v304 = vpop.f32.mrb[0].mxu0
    %v305 = vadd.f32 %v220, %v304
    %v306 = vpop.f32.mrb[0].mxu0
    %307 = vdwg.mxu0
    %v308 = vld [vmem:[#allocation2 + $0x2] sm:$0xff]
    %v309 = vld [vmem:[#allocation2 + $0xa] sm:$0xff]
    %v310 = vld [vmem:[#allocation2 + $0x1a] sm:$0xff]
    %v311 = vld [vmem:[#allocation2 + $0x22] sm:$0xff]
    %s312 = scalar_lea.vmem [#allocation6], 256
    %v313 = vld [vmem:[%s312] sm:$0xff]
    %v314 = vld [vmem:[%s312 + $0x8] sm:$0xff]
    %v315 = vld [vmem:[%s312 + $0x10] sm:$0xff]
    %v316 = vld [vmem:[%s312 + $0x18] sm:$0xff]
    %v317 = vld [vmem:[%s312 + $0x20] sm:$0xff]
    %v318 = vld [vmem:[%s312 + $0x28] sm:$0xff]
    %v319 = vld [vmem:[%s312 + $0x30] sm:$0xff]
    %v320 = vld [vmem:[%s312 + $0x38] sm:$0xff]
    %v321 = vld [vmem:[%s312 + $0x40] sm:$0xff]
    %v322 = vld [vmem:[%s312 + $0x48] sm:$0xff]
    %v323 = vld [vmem:[%s312 + $0x50] sm:$0xff]
    %v324 = vld [vmem:[%s312 + $0x58] sm:$0xff]
    %v325 = vld [vmem:[%s312 + $0x60] sm:$0xff]
    %v326 = vld [vmem:[%s312 + $0x68] sm:$0xff]
    %v327 = vld [vmem:[%s312 + $0x70] sm:$0xff]
    %v328 = vld [vmem:[%s312 + $0x78] sm:$0xff]
    %329 = vmatprep.subr.mxu0 0.0
    %330 = vmatpush1.msra.mxu0 %v313
    %331 = vmatprep.subr.mxu0 0.0
    %332 = vmatpush1.msra.mxu0 %v314
    %333 = vmatprep.subr.mxu0 0.0
    %334 = vmatpush1.msra.mxu0 %v315
    %335 = vmatprep.subr.mxu0 0.0
    %336 = vmatpush1.msra.mxu0 %v316
    %337 = vmatprep.subr.mxu0 0.0
    %338 = vmatpush1.msra.mxu0 %v317
    %339 = vmatprep.subr.mxu0 0.0
    %340 = vmatpush1.msra.mxu0 %v318
    %341 = vmatprep.subr.mxu0 0.0
    %342 = vmatpush1.msra.mxu0 %v319
    %343 = vmatprep.subr.mxu0 0.0
    %344 = vmatpush1.msra.mxu0 %v320
    %345 = vmatprep.subr.mxu0 0.0
    %346 = vmatpush1.msra.mxu0 %v321
    %347 = vmatprep.subr.mxu0 0.0
    %348 = vmatpush1.msra.mxu0 %v322
    %349 = vmatprep.subr.mxu0 0.0
    %350 = vmatpush1.msra.mxu0 %v323
    %351 = vmatprep.subr.mxu0 0.0
    %352 = vmatpush1.msra.mxu0 %v324
    %353 = vmatprep.subr.mxu0 0.0
    %354 = vmatpush1.msra.mxu0 %v325
    %355 = vmatprep.subr.mxu0 0.0
    %356 = vmatpush1.msra.mxu0 %v326
    %357 = vmatprep.subr.mxu0 0.0
    %358 = vmatpush1.msra.mxu0 %v327
    %359 = vmatprep.subr.mxu0 0.0
    %360 = vmatpush1.msra.mxu0 %v328
    %361 = vmatprep.subr.mxu0 0.0
    %362 = vmatpush1.msra.mxu0 0.0
    %363 = vmatprep.subr.mxu0 0.0
    %364 = vmatpush1.msra.mxu0 0.0
    %365 = vmatprep.subr.mxu0 0.0
    %366 = vmatpush1.msra.mxu0 0.0
    %367 = vmatprep.subr.mxu0 0.0
    %368 = vmatpush1.msra.mxu0 0.0
    %369 = vmatprep.subr.mxu0 0.0
    %370 = vmatpush1.msra.mxu0 0.0
    %371 = vmatprep.subr.mxu0 0.0
    %372 = vmatpush1.msra.mxu0 0.0
    %373 = vmatprep.subr.mxu0 0.0
    %374 = vmatpush1.msra.mxu0 0.0
    %375 = vmatprep.subr.mxu0 0.0
    %376 = vmatpush1.msra.mxu0 0.0
    %377 = vmatprep.subr.mxu0 0.0
    %378 = vmatpush1.msra.mxu0 0.0
    %379 = vmatprep.subr.mxu0 0.0
    %380 = vmatpush1.msra.mxu0 0.0
    %381 = vmatprep.subr.mxu0 0.0
    %382 = vmatpush1.msra.mxu0 0.0
    %383 = vmatprep.subr.mxu0 0.0
    %384 = vmatpush1.msra.mxu0 0.0
    %385 = vmatprep.subr.mxu0 0.0
    %386 = vmatpush1.msra.mxu0 0.0
    %387 = vmatprep.subr.mxu0 0.0
    %388 = vmatpush1.msra.mxu0 0.0
    %389 = vmatprep.subr.mxu0 0.0
    %390 = vmatpush1.msra.mxu0 0.0
    %391 = vmatprep.subr.mxu0 0.0
    %392 = vmatpush1.msra.mxu0 0.0
    %393 = vmatprep.mubr.f32.mxu0 0.0
    %394 = vmatmul.mubr.f32.gmra.mrb[0].mxu0 %v308
    %v395 = vpop.f32.mrb[0].mxu0
    %v396 = vadd.f32 0.0, %v395
    %v397 = vpop.f32.mrb[0].mxu0
    %398 = vmatprep.mubr.f32.mxu0 0.0
    %399 = vmatmul.mubr.f32.gmra.mrb[0].mxu0 %v309
    %v400 = vpop.f32.mrb[0].mxu0
    %v401 = vadd.f32 0.0, %v400
    %v402 = vpop.f32.mrb[0].mxu0
    %403 = vmatprep.mubr.f32.mxu0 0.0
    %404 = vmatmul.mubr.f32.gmra.mrb[0].mxu0 %v310
    %v405 = vpop.f32.mrb[0].mxu0
    %v406 = vadd.f32 0.0, %v405
    %v407 = vpop.f32.mrb[0].mxu0
    %408 = vmatprep.mubr.f32.mxu0 0.0
    %409 = vmatmul.mubr.f32.gmra.mrb[0].mxu0 %v311
    %v410 = vpop.f32.mrb[0].mxu0
    %v411 = vadd.f32 0.0, %v410
    %v412 = vpop.f32.mrb[0].mxu0
    %413 = vdwg.mxu0
    %v414 = vadd.f32 %v290, %v396
    %v415 = vadd.f32 %v295, %v401
    %v416 = vadd.f32 %v300, %v406
    %v417 = vadd.f32 %v305, %v411
    %v418 = vld [vmem:[%s4] sm:$0x1]
    %v419 = vld [vmem:[%s5] sm:$0x1]
    %v420 = vadd.f32 %v414, %v415
    %v421 = vadd.f32 %v420, %v416
    %v422 = vadd.f32 %v421, %v417
    %v423 = vrot.slane %v422, 4
    %v424 = vadd.f32 %v422, %v423
    %v425 = vrot.slane %v424, 2
    %v426 = vadd.f32 %v424, %v425
    %v427 = vrot.slane %v426, 1
    %v428 = vadd.f32 %v426, %v427
    %v429 = vmul.f32 %v414, %v414
    %v430 = vmul.f32 %v415, %v415
    %v431 = vmul.f32 %v416, %v416
    %v432 = vmul.f32 %v417, %v417
    %v433 = vadd.f32 %v429, %v430
    %v434 = vadd.f32 %v433, %v431
    %v435 = vadd.f32 %v434, %v432
    %v436 = vrot.slane %v435, 4
    %v437 = vadd.f32 %v435, %v436
    %v438 = vrot.slane %v437, 2
    %v439 = vadd.f32 %v437, %v438
    %v440 = vrot.slane %v439, 1
    %v441 = vadd.f32 %v439, %v440
    %v442 = vld [vmem:[#allocation9] sm:$0xff]
    %v443 = vld [vmem:[#allocation9 + $0x8] sm:$0xff]
    %v444 = vld [vmem:[#allocation9 + $0x10] sm:$0xff]
    %v445 = vld [vmem:[#allocation9 + $0x18] sm:$0xff]
    %v446 = vld [vmem:[#allocation9 + $0x20] sm:$0xff]
    %v447 = vld [vmem:[#allocation9 + $0x28] sm:$0xff]
    %v448 = vld [vmem:[#allocation9 + $0x30] sm:$0xff]
    %v449 = vld [vmem:[#allocation9 + $0x38] sm:$0xff]
    %v450 = vld [vmem:[#allocation9 + $0x40] sm:$0xff]
    %v451 = vld [vmem:[#allocation9 + $0x48] sm:$0xff]
    %v452 = vld [vmem:[#allocation9 + $0x50] sm:$0xff]
    %v453 = vld [vmem:[#allocation9 + $0x58] sm:$0xff]
    %v454 = vld [vmem:[#allocation9 + $0x60] sm:$0xff]
    %v455 = vld [vmem:[#allocation9 + $0x68] sm:$0xff]
    %v456 = vld [vmem:[#allocation9 + $0x70] sm:$0xff]
    %v457 = vld [vmem:[#allocation9 + $0x78] sm:$0xff]
    %458 = vmatprep.subr.mxu0 0.0
    %459 = vmatpush1.msra.mxu0 %v442
    %460 = vmatprep.subr.mxu0 0.0
    %461 = vmatpush1.msra.mxu0 %v443
    %462 = vmatprep.subr.mxu0 0.0
    %463 = vmatpush1.msra.mxu0 %v444
    %464 = vmatprep.subr.mxu0 0.0
    %465 = vmatpush1.msra.mxu0 %v445
    %466 = vmatprep.subr.mxu0 0.0
    %467 = vmatpush1.msra.mxu0 %v446
    %468 = vmatprep.subr.mxu0 0.0
    %469 = vmatpush1.msra.mxu0 %v447
    %470 = vmatprep.subr.mxu0 0.0
    %471 = vmatpush1.msra.mxu0 %v448
    %472 = vmatprep.subr.mxu0 0.0
    %473 = vmatpush1.msra.mxu0 %v449
    %474 = vmatprep.subr.mxu0 0.0
    %475 = vmatpush1.msra.mxu0 %v450
    %476 = vmatprep.subr.mxu0 0.0
    %477 = vmatpush1.msra.mxu0 %v451
    %478 = vmatprep.subr.mxu0 0.0
    %479 = vmatpush1.msra.mxu0 %v452
    %480 = vmatprep.subr.mxu0 0.0
    %481 = vmatpush1.msra.mxu0 %v453
    %482 = vmatprep.subr.mxu0 0.0
    %483 = vmatpush1.msra.mxu0 %v454
    %484 = vmatprep.subr.mxu0 0.0
    %485 = vmatpush1.msra.mxu0 %v455
    %486 = vmatprep.subr.mxu0 0.0
    %487 = vmatpush1.msra.mxu0 %v456
    %488 = vmatprep.subr.mxu0 0.0
    %489 = vmatpush1.msra.mxu0 %v457
    %490 = vmatprep.subr.mxu0 0.0
    %491 = vmatpush1.msra.mxu0 0.0
    %492 = vmatprep.subr.mxu0 0.0
    %493 = vmatpush1.msra.mxu0 0.0
    %494 = vmatprep.subr.mxu0 0.0
    %495 = vmatpush1.msra.mxu0 0.0
    %496 = vmatprep.subr.mxu0 0.0
    %497 = vmatpush1.msra.mxu0 0.0
    %498 = vmatprep.subr.mxu0 0.0
    %499 = vmatpush1.msra.mxu0 0.0
    %500 = vmatprep.subr.mxu0 0.0
    %501 = vmatpush1.msra.mxu0 0.0
    %502 = vmatprep.subr.mxu0 0.0
    %503 = vmatpush1.msra.mxu0 0.0
    %504 = vmatprep.subr.mxu0 0.0
    %505 = vmatpush1.msra.mxu0 0.0
    %506 = vmatprep.subr.mxu0 0.0
    %507 = vmatpush1.msra.mxu0 0.0
    %508 = vmatprep.subr.mxu0 0.0
    %509 = vmatpush1.msra.mxu0 0.0
    %510 = vmatprep.subr.mxu0 0.0
    %511 = vmatpush1.msra.mxu0 0.0
    %512 = vmatprep.subr.mxu0 0.0
    %513 = vmatpush1.msra.mxu0 0.0
    %514 = vmatprep.subr.mxu0 0.0
    %515 = vmatpush1.msra.mxu0 0.0
    %516 = vmatprep.subr.mxu0 0.0
    %517 = vmatpush1.msra.mxu0 0.0
    %518 = vmatprep.subr.mxu0 0.0
    %519 = vmatpush1.msra.mxu0 0.0
    %520 = vmatprep.subr.mxu0 0.0
    %521 = vmatpush1.msra.mxu0 0.0
    %522 = vmatprep.mubr.f32.mxu0 0.0
    %523 = vmatmul.mubr.f32.gmra.mrb[0].mxu0 %v428
    %v524 = vpop.f32.mrb[0].mxu0
    %v525 = vadd.f32 0.0, %v524
    %v526 = vpop.f32.mrb[0].mxu0
    %527 = vdwg.mxu0
    %528 = vmatprep.subr.mxu0 0.0
    %529 = vmatpush1.msra.mxu0 %v442
    %530 = vmatprep.subr.mxu0 0.0
    %531 = vmatpush1.msra.mxu0 %v443
    %532 = vmatprep.subr.mxu0 0.0
    %533 = vmatpush1.msra.mxu0 %v444
    %534 = vmatprep.subr.mxu0 0.0
    %535 = vmatpush1.msra.mxu0 %v445
    %536 = vmatprep.subr.mxu0 0.0
    %537 = vmatpush1.msra.mxu0 %v446
    %538 = vmatprep.subr.mxu0 0.0
    %539 = vmatpush1.msra.mxu0 %v447
    %540 = vmatprep.subr.mxu0 0.0
    %541 = vmatpush1.msra.mxu0 %v448
    %542 = vmatprep.subr.mxu0 0.0
    %543 = vmatpush1.msra.mxu0 %v449
    %544 = vmatprep.subr.mxu0 0.0
    %545 = vmatpush1.msra.mxu0 %v450
    %546 = vmatprep.subr.mxu0 0.0
    %547 = vmatpush1.msra.mxu0 %v451
    %548 = vmatprep.subr.mxu0 0.0
    %549 = vmatpush1.msra.mxu0 %v452
    %550 = vmatprep.subr.mxu0 0.0
    %551 = vmatpush1.msra.mxu0 %v453
    %552 = vmatprep.subr.mxu0 0.0
    %553 = vmatpush1.msra.mxu0 %v454
    %554 = vmatprep.subr.mxu0 0.0
    %555 = vmatpush1.msra.mxu0 %v455
    %556 = vmatprep.subr.mxu0 0.0
    %557 = vmatpush1.msra.mxu0 %v456
    %558 = vmatprep.subr.mxu0 0.0
    %559 = vmatpush1.msra.mxu0 %v457
    %560 = vmatprep.subr.mxu0 0.0
    %561 = vmatpush1.msra.mxu0 0.0
    %562 = vmatprep.subr.mxu0 0.0
    %563 = vmatpush1.msra.mxu0 0.0
    %564 = vmatprep.subr.mxu0 0.0
    %565 = vmatpush1.msra.mxu0 0.0
    %566 = vmatprep.subr.mxu0 0.0
    %567 = vmatpush1.msra.mxu0 0.0
    %568 = vmatprep.subr.mxu0 0.0
    %569 = vmatpush1.msra.mxu0 0.0
    %570 = vmatprep.subr.mxu0 0.0
    %571 = vmatpush1.msra.mxu0 0.0
    %572 = vmatprep.subr.mxu0 0.0
    %573 = vmatpush1.msra.mxu0 0.0
    %574 = vmatprep.subr.mxu0 0.0
    %575 = vmatpush1.msra.mxu0 0.0
    %576 = vmatprep.subr.mxu0 0.0
    %577 = vmatpush1.msra.mxu0 0.0
    %578 = vmatprep.subr.mxu0 0.0
    %579 = vmatpush1.msra.mxu0 0.0
    %580 = vmatprep.subr.mxu0 0.0
    %581 = vmatpush1.msra.mxu0 0.0
    %582 = vmatprep.subr.mxu0 0.0
    %583 = vmatpush1.msra.mxu0 0.0
    %584 = vmatprep.subr.mxu0 0.0
    %585 = vmatpush1.msra.mxu0 0.0
    %586 = vmatprep.subr.mxu0 0.0
    %587 = vmatpush1.msra.mxu0 0.0
    %588 = vmatprep.subr.mxu0 0.0
    %589 = vmatpush1.msra.mxu0 0.0
    %590 = vmatprep.subr.mxu0 0.0
    %591 = vmatpush1.msra.mxu0 0.0
    %592 = vmatprep.mubr.f32.mxu0 0.0
    %593 = vmatmul.mubr.f32.gmra.mrb[0].mxu0 %v441
    %v594 = vpop.f32.mrb[0].mxu0
    %v595 = vadd.f32 0.0, %v594
    %v596 = vpop.f32.mrb[0].mxu0
    %597 = vdwg.mxu0
    %v598 = vmul.f32 %v525, %v525
    %v599 = vsub.f32 %v595, %v598
    %v600 = vmax.f32 %v599, 0.0
    %v601 = vadd.f32 %v600, 1e-05
    %v602 = vrsqrt.pop %v601
    %v603 = vmul.f32 %v418, %v602
    %v604 = vmul.f32 %v525, %v603
    %v605 = vsub.f32 %v419, %v604
    %v607 = vlaneseq
    %v608 = vshrl.u32 %v607, 7
    %v609 = vsub.s32 0, %v608
    %v610 = vrot.slane %v603, %v609
    %v612 = vmul.f32 %v414, %v610
    %v613 = vmul.f32 %v415, %v610
    %v614 = vmul.f32 %v416, %v610
    %v615 = vmul.f32 %v417, %v610
    %v617 = vlaneseq
    %v618 = vshrl.u32 %v617, 7
    %v619 = vsub.s32 0, %v618
    %v620 = vrot.slane %v605, %v619
    %v622 = vadd.f32 %v612, %v620
    %v623 = vadd.f32 %v613, %v620
    %v624 = vadd.f32 %v614, %v620
    %v625 = vadd.f32 %v615, %v620
    %v626 = vmax.f32 %v622, 0.0
    %v627 = vmax.f32 %v623, 0.0
    %v628 = vmax.f32 %v624, 0.0
    %v629 = vmax.f32 %v625, 0.0
    %630 = vst [vmem:[#allocation2 + $0x1] sm:$0xff] %v626
    %631 = vst [vmem:[#allocation2 + $0x9] sm:$0xff] %v627
    %632 = vst [vmem:[#allocation2 + $0x19] sm:$0xff] %v628
    %633 = vst [vmem:[#allocation2 + $0x21] sm:$0xff] %v629
    %v634 = vld [vmem:[#allocation2] sm:$0xff]
    %v635 = vld [vmem:[#allocation2 + $0x8] sm:$0xff]
    %v636 = vld [vmem:[#allocation2 + $0x18] sm:$0xff]
    %v637 = vld [vmem:[#allocation2 + $0x20] sm:$0xff]
    %v638 = vld [vmem:[#allocation8] sm:$0xff]
    %v639 = vld [vmem:[#allocation8 + $0x8] sm:$0xff]
    %v640 = vld [vmem:[#allocation8 + $0x10] sm:$0xff]
    %v641 = vld [vmem:[#allocation8 + $0x18] sm:$0xff]
    %v642 = vld [vmem:[#allocation8 + $0x20] sm:$0xff]
    %v643 = vld [vmem:[#allocation8 + $0x28] sm:$0xff]
    %v644 = vld [vmem:[#allocation8 + $0x30] sm:$0xff]
    %v645 = vld [vmem:[#allocation8 + $0x38] sm:$0xff]
    %v646 = vld [vmem:[#allocation8 + $0x40] sm:$0xff]
    %v647 = vld [vmem:[#allocation8 + $0x48] sm:$0xff]
    %v648 = vld [vmem:[#allocation8 + $0x50] sm:$0xff]
    %v649 = vld [vmem:[#allocation8 + $0x58] sm:$0xff]
    %v650 = vld [vmem:[#allocation8 + $0x60] sm:$0xff]
    %v651 = vld [vmem:[#allocation8 + $0x68] sm:$0xff]
    %v652 = vld [vmem:[#allocation8 + $0x70] sm:$0xff]
    %v653 = vld [vmem:[#allocation8 + $0x78] sm:$0xff]
    %v654 = vld [vmem:[#allocation2 + $0x1] sm:$0xff]
    %v655 = vld [vmem:[#allocation2 + $0x9] sm:$0xff]
    %v656 = vld [vmem:[#allocation2 + $0x19] sm:$0xff]
    %v657 = vld [vmem:[#allocation2 + $0x21] sm:$0xff]
    %s658 = scalar_lea.vmem [#allocation8], 128
    %v659 = vld [vmem:[%s658] sm:$0xff]
    %v660 = vld [vmem:[%s658 + $0x8] sm:$0xff]
    %v661 = vld [vmem:[%s658 + $0x10] sm:$0xff]
    %v662 = vld [vmem:[%s658 + $0x18] sm:$0xff]
    %v663 = vld [vmem:[%s658 + $0x20] sm:$0xff]
    %v664 = vld [vmem:[%s658 + $0x28] sm:$0xff]
    %v665 = vld [vmem:[%s658 + $0x30] sm:$0xff]
    %v666 = vld [vmem:[%s658 + $0x38] sm:$0xff]
    %v667 = vld [vmem:[%s658 + $0x40] sm:$0xff]
    %v668 = vld [vmem:[%s658 + $0x48] sm:$0xff]
    %v669 = vld [vmem:[%s658 + $0x50] sm:$0xff]
    %v670 = vld [vmem:[%s658 + $0x58] sm:$0xff]
    %v671 = vld [vmem:[%s658 + $0x60] sm:$0xff]
    %v672 = vld [vmem:[%s658 + $0x68] sm:$0xff]
    %v673 = vld [vmem:[%s658 + $0x70] sm:$0xff]
    %v674 = vld [vmem:[%s658 + $0x78] sm:$0xff]
    %675 = vmatprep.subr.mxu0 0.0
    %676 = vmatpush1.msra.mxu0 %v659
    %677 = vmatprep.subr.mxu0 0.0
    %678 = vmatpush1.msra.mxu0 %v660
    %679 = vmatprep.subr.mxu0 0.0
    %680 = vmatpush1.msra.mxu0 %v661
    %681 = vmatprep.subr.mxu0 0.0
    %682 = vmatpush1.msra.mxu0 %v662
    %683 = vmatprep.subr.mxu0 0.0
    %684 = vmatpush1.msra.mxu0 %v663
    %685 = vmatprep.subr.mxu0 0.0
    %686 = vmatpush1.msra.mxu0 %v664
    %687 = vmatprep.subr.mxu0 0.0
    %688 = vmatpush1.msra.mxu0 %v665
    %689 = vmatprep.subr.mxu0 0.0
    %690 = vmatpush1.msra.mxu0 %v666
    %691 = vmatprep.subr.mxu0 0.0
    %692 = vmatpush1.msra.mxu0 %v667
    %693 = vmatprep.subr.mxu0 0.0
    %694 = vmatpush1.msra.mxu0 %v668
    %695 = vmatprep.subr.mxu0 0.0
    %696 = vmatpush1.msra.mxu0 %v669
    %697 = vmatprep.subr.mxu0 0.0
    %698 = vmatpush1.msra.mxu0 %v670
    %699 = vmatprep.subr.mxu0 0.0
    %700 = vmatpush1.msra.mxu0 %v671
    %701 = vmatprep.subr.mxu0 0.0
    %702 = vmatpush1.msra.mxu0 %v672
    %703 = vmatprep.subr.mxu0 0.0
    %704 = vmatpush1.msra.mxu0 %v673
    %705 = vmatprep.subr.mxu0 0.0
    %706 = vmatpush1.msra.mxu0 %v674
    %707 = vmatprep.subr.mxu0 0.0
    %708 = vmatpush1.msra.mxu0 0.0
    %709 = vmatprep.subr.mxu0 0.0
    %710 = vmatpush1.msra.mxu0 0.0
    %711 = vmatprep.subr.mxu0 0.0
    %712 = vmatpush1.msra.mxu0 0.0
    %713 = vmatprep.subr.mxu0 0.0
    %714 = vmatpush1.msra.mxu0 0.0
    %715 = vmatprep.subr.mxu0 0.0
    %716 = vmatpush1.msra.mxu0 0.0
    %717 = vmatprep.subr.mxu0 0.0
    %718 = vmatpush1.msra.mxu0 0.0
    %719 = vmatprep.subr.mxu0 0.0
    %720 = vmatpush1.msra.mxu0 0.0
    %721 = vmatprep.subr.mxu0 0.0
    %722 = vmatpush1.msra.mxu0 0.0
    %723 = vmatprep.subr.mxu0 0.0
    %724 = vmatpush1.msra.mxu0 0.0
    %725 = vmatprep.subr.mxu0 0.0
    %726 = vmatpush1.msra.mxu0 0.0
    %727 = vmatprep.subr.mxu0 0.0
    %728 = vmatpush1.msra.mxu0 0.0
    %729 = vmatprep.subr.mxu0 0.0
    %730 = vmatpush1.msra.mxu0 0.0
    %731 = vmatprep.subr.mxu0 0.0
    %732 = vmatpush1.msra.mxu0 0.0
    %733 = vmatprep.subr.mxu0 0.0
    %734 = vmatpush1.msra.mxu0 0.0
    %735 = vmatprep.subr.mxu0 0.0
    %736 = vmatpush1.msra.mxu0 0.0
    %737 = vmatprep.subr.mxu0 0.0
    %738 = vmatpush1.msra.mxu0 0.0
    %739 = vmatprep.mubr.f32.mxu0 0.0
    %740 = vmatmul.mubr.f32.gmra.mrb[0].mxu0 %v654
    %v741 = vpop.f32.mrb[0].mxu0
    %v742 = vadd.f32 0.0, %v741
    %v743 = vpop.f32.mrb[0].mxu0
    %744 = vmatprep.mubr.f32.mxu0 0.0
    %745 = vmatmul.mubr.f32.gmra.mrb[0].mxu0 %v655
    %v746 = vpop.f32.mrb[0].mxu0
    %v747 = vadd.f32 0.0, %v746
    %v748 = vpop.f32.mrb[0].mxu0
    %749 = vmatprep.mubr.f32.mxu0 0.0
    %750 = vmatmul.mubr.f32.gmra.mrb[0].mxu0 %v656
    %v751 = vpop.f32.mrb[0].mxu0
    %v752 = vadd.f32 0.0, %v751
    %v753 = vpop.f32.mrb[0].mxu0
    %754 = vmatprep.mubr.f32.mxu0 0.0
    %755 = vmatmul.mubr.f32.gmra.mrb[0].mxu0 %v657
    %v756 = vpop.f32.mrb[0].mxu0
    %v757 = vadd.f32 0.0, %v756
    %v758 = vpop.f32.mrb[0].mxu0
    %759 = vdwg.mxu0
    %760 = vmatprep.subr.mxu0 0.0
    %761 = vmatpush1.msra.mxu0 %v638
    %762 = vmatprep.subr.mxu0 0.0
    %763 = vmatpush1.msra.mxu0 %v639
    %764 = vmatprep.subr.mxu0 0.0
    %765 = vmatpush1.msra.mxu0 %v640
    %766 = vmatprep.subr.mxu0 0.0
    %767 = vmatpush1.msra.mxu0 %v641
    %768 = vmatprep.subr.mxu0 0.0
    %769 = vmatpush1.msra.mxu0 %v642
    %770 = vmatprep.subr.mxu0 0.0
    %771 = vmatpush1.msra.mxu0 %v643
    %772 = vmatprep.subr.mxu0 0.0
    %773 = vmatpush1.msra.mxu0 %v644
    %774 = vmatprep.subr.mxu0 0.0
    %775 = vmatpush1.msra.mxu0 %v645
    %776 = vmatprep.subr.mxu0 0.0
    %777 = vmatpush1.msra.mxu0 %v646
    %778 = vmatprep.subr.mxu0 0.0
    %779 = vmatpush1.msra.mxu0 %v647
    %780 = vmatprep.subr.mxu0 0.0
    %781 = vmatpush1.msra.mxu0 %v648
    %782 = vmatprep.subr.mxu0 0.0
    %783 = vmatpush1.msra.mxu0 %v649
    %784 = vmatprep.subr.mxu0 0.0
    %785 = vmatpush1.msra.mxu0 %v650
    %786 = vmatprep.subr.mxu0 0.0
    %787 = vmatpush1.msra.mxu0 %v651
    %788 = vmatprep.subr.mxu0 0.0
    %789 = vmatpush1.msra.mxu0 %v652
    %790 = vmatprep.subr.mxu0 0.0
    %791 = vmatpush1.msra.mxu0 %v653
    %792 = vmatprep.subr.mxu0 0.0
    %793 = vmatpush1.msra.mxu0 0.0
    %794 = vmatprep.subr.mxu0 0.0
    %795 = vmatpush1.msra.mxu0 0.0
    %796 = vmatprep.subr.mxu0 0.0
    %797 = vmatpush1.msra.mxu0 0.0
    %798 = vmatprep.subr.mxu0 0.0
    %799 = vmatpush1.msra.mxu0 0.0
    %800 = vmatprep.subr.mxu0 0.0
    %801 = vmatpush1.msra.mxu0 0.0
    %802 = vmatprep.subr.mxu0 0.0
    %803 = vmatpush1.msra.mxu0 0.0
    %804 = vmatprep.subr.mxu0 0.0
    %805 = vmatpush1.msra.mxu0 0.0
    %806 = vmatprep.subr.mxu0 0.0
    %807 = vmatpush1.msra.mxu0 0.0
    %808 = vmatprep.subr.mxu0 0.0
    %809 = vmatpush1.msra.mxu0 0.0
    %810 = vmatprep.subr.mxu0 0.0
    %811 = vmatpush1.msra.mxu0 0.0
    %812 = vmatprep.subr.mxu0 0.0
    %813 = vmatpush1.msra.mxu0 0.0
    %814 = vmatprep.subr.mxu0 0.0
    %815 = vmatpush1.msra.mxu0 0.0
    %816 = vmatprep.subr.mxu0 0.0
    %817 = vmatpush1.msra.mxu0 0.0
    %818 = vmatprep.subr.mxu0 0.0
    %819 = vmatpush1.msra.mxu0 0.0
    %820 = vmatprep.subr.mxu0 0.0
    %821 = vmatpush1.msra.mxu0 0.0
    %822 = vmatprep.subr.mxu0 0.0
    %823 = vmatpush1.msra.mxu0 0.0
    %824 = vmatprep.mubr.f32.mxu0 0.0
    %825 = vmatmul.mubr.f32.gmra.mrb[0].mxu0 %v634
    %v826 = vpop.f32.mrb[0].mxu0
    %v827 = vadd.f32 %v742, %v826
    %v828 = vpop.f32.mrb[0].mxu0
    %829 = vmatprep.mubr.f32.mxu0 0.0
    %830 = vmatmul.mubr.f32.gmra.mrb[0].mxu0 %v635
    %v831 = vpop.f32.mrb[0].mxu0
    %v832 = vadd.f32 %v747, %v831
    %v833 = vpop.f32.mrb[0].mxu0
    %834 = vmatprep.mubr.f32.mxu0 0.0
    %835 = vmatmul.mubr.f32.gmra.mrb[0].mxu0 %v636
    %v836 = vpop.f32.mrb[0].mxu0
    %v837 = vadd.f32 %v752, %v836
    %v838 = vpop.f32.mrb[0].mxu0
    %839 = vmatprep.mubr.f32.mxu0 0.0
    %840 = vmatmul.mubr.f32.gmra.mrb[0].mxu0 %v637
    %v841 = vpop.f32.mrb[0].mxu0
    %v842 = vadd.f32 %v757, %v841
    %v843 = vpop.f32.mrb[0].mxu0
    %844 = vdwg.mxu0
    %v845 = vld [vmem:[#allocation2 + $0x2] sm:$0xff]
    %v846 = vld [vmem:[#allocation2 + $0xa] sm:$0xff]
    %v847 = vld [vmem:[#allocation2 + $0x1a] sm:$0xff]
    %v848 = vld [vmem:[#allocation2 + $0x22] sm:$0xff]
    %s849 = scalar_lea.vmem [#allocation8], 256
    %v850 = vld [vmem:[%s849] sm:$0xff]
    %v851 = vld [vmem:[%s849 + $0x8] sm:$0xff]
    %v852 = vld [vmem:[%s849 + $0x10] sm:$0xff]
    %v853 = vld [vmem:[%s849 + $0x18] sm:$0xff]
    %v854 = vld [vmem:[%s849 + $0x20] sm:$0xff]
    %v855 = vld [vmem:[%s849 + $0x28] sm:$0xff]
    %v856 = vld [vmem:[%s849 + $0x30] sm:$0xff]
    %v857 = vld [vmem:[%s849 + $0x38] sm:$0xff]
    %v858 = vld [vmem:[%s849 + $0x40] sm:$0xff]
    %v859 = vld [vmem:[%s849 + $0x48] sm:$0xff]
    %v860 = vld [vmem:[%s849 + $0x50] sm:$0xff]
    %v861 = vld [vmem:[%s849 + $0x58] sm:$0xff]
    %v862 = vld [vmem:[%s849 + $0x60] sm:$0xff]
    %v863 = vld [vmem:[%s849 + $0x68] sm:$0xff]
    %v864 = vld [vmem:[%s849 + $0x70] sm:$0xff]
    %v865 = vld [vmem:[%s849 + $0x78] sm:$0xff]
    %866 = vmatprep.subr.mxu0 0.0
    %867 = vmatpush1.msra.mxu0 %v850
    %868 = vmatprep.subr.mxu0 0.0
    %869 = vmatpush1.msra.mxu0 %v851
    %870 = vmatprep.subr.mxu0 0.0
    %871 = vmatpush1.msra.mxu0 %v852
    %872 = vmatprep.subr.mxu0 0.0
    %873 = vmatpush1.msra.mxu0 %v853
    %874 = vmatprep.subr.mxu0 0.0
    %875 = vmatpush1.msra.mxu0 %v854
    %876 = vmatprep.subr.mxu0 0.0
    %877 = vmatpush1.msra.mxu0 %v855
    %878 = vmatprep.subr.mxu0 0.0
    %879 = vmatpush1.msra.mxu0 %v856
    %880 = vmatprep.subr.mxu0 0.0
    %881 = vmatpush1.msra.mxu0 %v857
    %882 = vmatprep.subr.mxu0 0.0
    %883 = vmatpush1.msra.mxu0 %v858
    %884 = vmatprep.subr.mxu0 0.0
    %885 = vmatpush1.msra.mxu0 %v859
    %886 = vmatprep.subr.mxu0 0.0
    %887 = vmatpush1.msra.mxu0 %v860
    %888 = vmatprep.subr.mxu0 0.0
    %889 = vmatpush1.msra.mxu0 %v861
    %890 = vmatprep.subr.mxu0 0.0
    %891 = vmatpush1.msra.mxu0 %v862
    %892 = vmatprep.subr.mxu0 0.0
    %893 = vmatpush1.msra.mxu0 %v863
    %894 = vmatprep.subr.mxu0 0.0
    %895 = vmatpush1.msra.mxu0 %v864
    %896 = vmatprep.subr.mxu0 0.0
    %897 = vmatpush1.msra.mxu0 %v865
    %898 = vmatprep.subr.mxu0 0.0
    %899 = vmatpush1.msra.mxu0 0.0
    %900 = vmatprep.subr.mxu0 0.0
    %901 = vmatpush1.msra.mxu0 0.0
    %902 = vmatprep.subr.mxu0 0.0
    %903 = vmatpush1.msra.mxu0 0.0
    %904 = vmatprep.subr.mxu0 0.0
    %905 = vmatpush1.msra.mxu0 0.0
    %906 = vmatprep.subr.mxu0 0.0
    %907 = vmatpush1.msra.mxu0 0.0
    %908 = vmatprep.subr.mxu0 0.0
    %909 = vmatpush1.msra.mxu0 0.0
    %910 = vmatprep.subr.mxu0 0.0
    %911 = vmatpush1.msra.mxu0 0.0
    %912 = vmatprep.subr.mxu0 0.0
    %913 = vmatpush1.msra.mxu0 0.0
    %914 = vmatprep.subr.mxu0 0.0
    %915 = vmatpush1.msra.mxu0 0.0
    %916 = vmatprep.subr.mxu0 0.0
    %917 = vmatpush1.msra.mxu0 0.0
    %918 = vmatprep.subr.mxu0 0.0
    %919 = vmatpush1.msra.mxu0 0.0
    %920 = vmatprep.subr.mxu0 0.0
    %921 = vmatpush1.msra.mxu0 0.0
    %922 = vmatprep.subr.mxu0 0.0
    %923 = vmatpush1.msra.mxu0 0.0
    %924 = vmatprep.subr.mxu0 0.0
    %925 = vmatpush1.msra.mxu0 0.0
    %926 = vmatprep.subr.mxu0 0.0
    %927 = vmatpush1.msra.mxu0 0.0
    %928 = vmatprep.subr.mxu0 0.0
    %929 = vmatpush1.msra.mxu0 0.0
    %930 = vmatprep.mubr.f32.mxu0 0.0
    %931 = vmatmul.mubr.f32.gmra.mrb[0].mxu0 %v845
    %v932 = vpop.f32.mrb[0].mxu0
    %v933 = vadd.f32 0.0, %v932
    %v934 = vpop.f32.mrb[0].mxu0
    %935 = vmatprep.mubr.f32.mxu0 0.0
    %936 = vmatmul.mubr.f32.gmra.mrb[0].mxu0 %v846
    %v937 = vpop.f32.mrb[0].mxu0
    %v938 = vadd.f32 0.0, %v937
    %v939 = vpop.f32.mrb[0].mxu0
    %940 = vmatprep.mubr.f32.mxu0 0.0
    %941 = vmatmul.mubr.f32.gmra.mrb[0].mxu0 %v847
    %v942 = vpop.f32.mrb[0].mxu0
    %v943 = vadd.f32 0.0, %v942
    %v944 = vpop.f32.mrb[0].mxu0
    %945 = vmatprep.mubr.f32.mxu0 0.0
    %946 = vmatmul.mubr.f32.gmra.mrb[0].mxu0 %v848
    %v947 = vpop.f32.mrb[0].mxu0
    %v948 = vadd.f32 0.0, %v947
    %v949 = vpop.f32.mrb[0].mxu0
    %950 = vdwg.mxu0
    %v951 = vadd.f32 %v827, %v933
    %v952 = vadd.f32 %v832, %v938
    %v953 = vadd.f32 %v837, %v943
    %v954 = vadd.f32 %v842, %v948
    %v955 = vld [vmem:[%s6] sm:$0x1]
    %v956 = vld [vmem:[%s7] sm:$0x1]
    %v957 = vadd.f32 %v951, %v952
    %v958 = vadd.f32 %v957, %v953
    %v959 = vadd.f32 %v958, %v954
    %v960 = vrot.slane %v959, 4
    %v961 = vadd.f32 %v959, %v960
    %v962 = vrot.slane %v961, 2
    %v963 = vadd.f32 %v961, %v962
    %v964 = vrot.slane %v963, 1
    %v965 = vadd.f32 %v963, %v964
    %v966 = vmul.f32 %v951, %v951
    %v967 = vmul.f32 %v952, %v952
    %v968 = vmul.f32 %v953, %v953
    %v969 = vmul.f32 %v954, %v954
    %v970 = vadd.f32 %v966, %v967
    %v971 = vadd.f32 %v970, %v968
    %v972 = vadd.f32 %v971, %v969
    %v973 = vrot.slane %v972, 4
    %v974 = vadd.f32 %v972, %v973
    %v975 = vrot.slane %v974, 2
    %v976 = vadd.f32 %v974, %v975
    %v977 = vrot.slane %v976, 1
    %v978 = vadd.f32 %v976, %v977
    %v979 = vld [vmem:[#allocation9] sm:$0xff]
    %v980 = vld [vmem:[#allocation9 + $0x8] sm:$0xff]
    %v981 = vld [vmem:[#allocation9 + $0x10] sm:$0xff]
    %v982 = vld [vmem:[#allocation9 + $0x18] sm:$0xff]
    %v983 = vld [vmem:[#allocation9 + $0x20] sm:$0xff]
    %v984 = vld [vmem:[#allocation9 + $0x28] sm:$0xff]
    %v985 = vld [vmem:[#allocation9 + $0x30] sm:$0xff]
    %v986 = vld [vmem:[#allocation9 + $0x38] sm:$0xff]
    %v987 = vld [vmem:[#allocation9 + $0x40] sm:$0xff]
    %v988 = vld [vmem:[#allocation9 + $0x48] sm:$0xff]
    %v989 = vld [vmem:[#allocation9 + $0x50] sm:$0xff]
    %v990 = vld [vmem:[#allocation9 + $0x58] sm:$0xff]
    %v991 = vld [vmem:[#allocation9 + $0x60] sm:$0xff]
    %v992 = vld [vmem:[#allocation9 + $0x68] sm:$0xff]
    %v993 = vld [vmem:[#allocation9 + $0x70] sm:$0xff]
    %v994 = vld [vmem:[#allocation9 + $0x78] sm:$0xff]
    %995 = vmatprep.subr.mxu0 0.0
    %996 = vmatpush1.msra.mxu0 %v979
    %997 = vmatprep.subr.mxu0 0.0
    %998 = vmatpush1.msra.mxu0 %v980
    %999 = vmatprep.subr.mxu0 0.0
    %1000 = vmatpush1.msra.mxu0 %v981
    %1001 = vmatprep.subr.mxu0 0.0
    %1002 = vmatpush1.msra.mxu0 %v982
    %1003 = vmatprep.subr.mxu0 0.0
    %1004 = vmatpush1.msra.mxu0 %v983
    %1005 = vmatprep.subr.mxu0 0.0
    %1006 = vmatpush1.msra.mxu0 %v984
    %1007 = vmatprep.subr.mxu0 0.0
    %1008 = vmatpush1.msra.mxu0 %v985
    %1009 = vmatprep.subr.mxu0 0.0
    %1010 = vmatpush1.msra.mxu0 %v986
    %1011 = vmatprep.subr.mxu0 0.0
    %1012 = vmatpush1.msra.mxu0 %v987
    %1013 = vmatprep.subr.mxu0 0.0
    %1014 = vmatpush1.msra.mxu0 %v988
    %1015 = vmatprep.subr.mxu0 0.0
    %1016 = vmatpush1.msra.mxu0 %v989
    %1017 = vmatprep.subr.mxu0 0.0
    %1018 = vmatpush1.msra.mxu0 %v990
    %1019 = vmatprep.subr.mxu0 0.0
    %1020 = vmatpush1.msra.mxu0 %v991
    %1021 = vmatprep.subr.mxu0 0.0
    %1022 = vmatpush1.msra.mxu0 %v992
    %1023 = vmatprep.subr.mxu0 0.0
    %1024 = vmatpush1.msra.mxu0 %v993
    %1025 = vmatprep.subr.mxu0 0.0
    %1026 = vmatpush1.msra.mxu0 %v994
    %1027 = vmatprep.subr.mxu0 0.0
    %1028 = vmatpush1.msra.mxu0 0.0
    %1029 = vmatprep.subr.mxu0 0.0
    %1030 = vmatpush1.msra.mxu0 0.0
    %1031 = vmatprep.subr.mxu0 0.0
    %1032 = vmatpush1.msra.mxu0 0.0
    %1033 = vmatprep.subr.mxu0 0.0
    %1034 = vmatpush1.msra.mxu0 0.0
    %1035 = vmatprep.subr.mxu0 0.0
    %1036 = vmatpush1.msra.mxu0 0.0
    %1037 = vmatprep.subr.mxu0 0.0
    %1038 = vmatpush1.msra.mxu0 0.0
    %1039 = vmatprep.subr.mxu0 0.0
    %1040 = vmatpush1.msra.mxu0 0.0
    %1041 = vmatprep.subr.mxu0 0.0
    %1042 = vmatpush1.msra.mxu0 0.0
    %1043 = vmatprep.subr.mxu0 0.0
    %1044 = vmatpush1.msra.mxu0 0.0
    %1045 = vmatprep.subr.mxu0 0.0
    %1046 = vmatpush1.msra.mxu0 0.0
    %1047 = vmatprep.subr.mxu0 0.0
    %1048 = vmatpush1.msra.mxu0 0.0
    %1049 = vmatprep.subr.mxu0 0.0
    %1050 = vmatpush1.msra.mxu0 0.0
    %1051 = vmatprep.subr.mxu0 0.0
    %1052 = vmatpush1.msra.mxu0 0.0
    %1053 = vmatprep.subr.mxu0 0.0
    %1054 = vmatpush1.msra.mxu0 0.0
    %1055 = vmatprep.subr.mxu0 0.0
    %1056 = vmatpush1.msra.mxu0 0.0
    %1057 = vmatprep.subr.mxu0 0.0
    %1058 = vmatpush1.msra.mxu0 0.0
    %1059 = vmatprep.mubr.f32.mxu0 0.0
    %1060 = vmatmul.mubr.f32.gmra.mrb[0].mxu0 %v965
    %v1061 = vpop.f32.mrb[0].mxu0
    %v1062 = vadd.f32 0.0, %v1061
    %v1063 = vpop.f32.mrb[0].mxu0
    %1064 = vdwg.mxu0
    %1065 = vmatprep.subr.mxu0 0.0
    %1066 = vmatpush1.msra.mxu0 %v979
    %1067 = vmatprep.subr.mxu0 0.0
    %1068 = vmatpush1.msra.mxu0 %v980
    %1069 = vmatprep.subr.mxu0 0.0
    %1070 = vmatpush1.msra.mxu0 %v981
    %1071 = vmatprep.subr.mxu0 0.0
    %1072 = vmatpush1.msra.mxu0 %v982
    %1073 = vmatprep.subr.mxu0 0.0
    %1074 = vmatpush1.msra.mxu0 %v983
    %1075 = vmatprep.subr.mxu0 0.0
    %1076 = vmatpush1.msra.mxu0 %v984
    %1077 = vmatprep.subr.mxu0 0.0
    %1078 = vmatpush1.msra.mxu0 %v985
    %1079 = vmatprep.subr.mxu0 0.0
    %1080 = vmatpush1.msra.mxu0 %v986
    %1081 = vmatprep.subr.mxu0 0.0
    %1082 = vmatpush1.msra.mxu0 %v987
    %1083 = vmatprep.subr.mxu0 0.0
    %1084 = vmatpush1.msra.mxu0 %v988
    %1085 = vmatprep.subr.mxu0 0.0
    %1086 = vmatpush1.msra.mxu0 %v989
    %1087 = vmatprep.subr.mxu0 0.0
    %1088 = vmatpush1.msra.mxu0 %v990
    %1089 = vmatprep.subr.mxu0 0.0
    %1090 = vmatpush1.msra.mxu0 %v991
    %1091 = vmatprep.subr.mxu0 0.0
    %1092 = vmatpush1.msra.mxu0 %v992
    %1093 = vmatprep.subr.mxu0 0.0
    %1094 = vmatpush1.msra.mxu0 %v993
    %1095 = vmatprep.subr.mxu0 0.0
    %1096 = vmatpush1.msra.mxu0 %v994
    %1097 = vmatprep.subr.mxu0 0.0
    %1098 = vmatpush1.msra.mxu0 0.0
    %1099 = vmatprep.subr.mxu0 0.0
    %1100 = vmatpush1.msra.mxu0 0.0
    %1101 = vmatprep.subr.mxu0 0.0
    %1102 = vmatpush1.msra.mxu0 0.0
    %1103 = vmatprep.subr.mxu0 0.0
    %1104 = vmatpush1.msra.mxu0 0.0
    %1105 = vmatprep.subr.mxu0 0.0
    %1106 = vmatpush1.msra.mxu0 0.0
    %1107 = vmatprep.subr.mxu0 0.0
    %1108 = vmatpush1.msra.mxu0 0.0
    %1109 = vmatprep.subr.mxu0 0.0
    %1110 = vmatpush1.msra.mxu0 0.0
    %1111 = vmatprep.subr.mxu0 0.0
    %1112 = vmatpush1.msra.mxu0 0.0
    %1113 = vmatprep.subr.mxu0 0.0
    %1114 = vmatpush1.msra.mxu0 0.0
    %1115 = vmatprep.subr.mxu0 0.0
    %1116 = vmatpush1.msra.mxu0 0.0
    %1117 = vmatprep.subr.mxu0 0.0
    %1118 = vmatpush1.msra.mxu0 0.0
    %1119 = vmatprep.subr.mxu0 0.0
    %1120 = vmatpush1.msra.mxu0 0.0
    %1121 = vmatprep.subr.mxu0 0.0
    %1122 = vmatpush1.msra.mxu0 0.0
    %1123 = vmatprep.subr.mxu0 0.0
    %1124 = vmatpush1.msra.mxu0 0.0
    %1125 = vmatprep.subr.mxu0 0.0
    %1126 = vmatpush1.msra.mxu0 0.0
    %1127 = vmatprep.subr.mxu0 0.0
    %1128 = vmatpush1.msra.mxu0 0.0
    %1129 = vmatprep.mubr.f32.mxu0 0.0
    %1130 = vmatmul.mubr.f32.gmra.mrb[0].mxu0 %v978
    %v1131 = vpop.f32.mrb[0].mxu0
    %v1132 = vadd.f32 0.0, %v1131
    %v1133 = vpop.f32.mrb[0].mxu0
    %1134 = vdwg.mxu0
    %v1135 = vmul.f32 %v1062, %v1062
    %v1136 = vsub.f32 %v1132, %v1135
    %v1137 = vmax.f32 %v1136, 0.0
    %v1138 = vadd.f32 %v1137, 1e-05
    %v1139 = vrsqrt.pop %v1138
    %v1140 = vmul.f32 %v955, %v1139
    %v1141 = vmul.f32 %v1062, %v1140
    %v1142 = vsub.f32 %v956, %v1141
    %v1143 = vld [vmem:[#allocation3] sm:$0xff]
    %v1144 = vld [vmem:[#allocation3 + $0x8] sm:$0xff]
    %v1145 = vld [vmem:[#allocation3 + $0x10] sm:$0xff]
    %v1146 = vld [vmem:[#allocation3 + $0x18] sm:$0xff]
    %v1148 = vlaneseq
    %v1149 = vshrl.u32 %v1148, 7
    %v1150 = vsub.s32 0, %v1149
    %v1151 = vrot.slane %v1140, %v1150
    %v1153 = vmul.f32 %v951, %v1151
    %v1154 = vmul.f32 %v952, %v1151
    %v1155 = vmul.f32 %v953, %v1151
    %v1156 = vmul.f32 %v954, %v1151
    %v1157 = vadd.f32 %v1143, %v1153
    %v1158 = vadd.f32 %v1144, %v1154
    %v1159 = vadd.f32 %v1145, %v1155
    %v1160 = vadd.f32 %v1146, %v1156
    %v1162 = vlaneseq
    %v1163 = vshrl.u32 %v1162, 7
    %v1164 = vsub.s32 0, %v1163
    %v1165 = vrot.slane %v1142, %v1164
    %v1167 = vadd.f32 %v1157, %v1165
    %v1168 = vadd.f32 %v1158, %v1165
    %v1169 = vadd.f32 %v1159, %v1165
    %v1170 = vadd.f32 %v1160, %v1165
    %v1171 = vmax.f32 %v1167, 0.0
    %v1172 = vmax.f32 %v1168, 0.0
    %v1173 = vmax.f32 %v1169, 0.0
    %v1174 = vmax.f32 %v1170, 0.0
    %1175 = vst [vmem:[#allocation11] sm:$0xff] %v1171
    %1176 = vst [vmem:[#allocation11 + $0x8] sm:$0xff] %v1172
    %1177 = vst [vmem:[#allocation11 + $0x10] sm:$0xff] %v1173
    %1178 = vst [vmem:[#allocation11 + $0x18] sm:$0xff] %v1174
    // Predicated region
    $region50: #{tpu_custom_call.1} parent=1 // pred_check
      _
    $region51: #{tpu_custom_call.1} parent=1 // pred_check_branch
      %1180 = sbr.rel (0) target = $region53
    $region52: #{tpu_custom_call.1} parent=1 // pred_region
      %s1182 = ssub.s32 512, 512
      %1183 = vsyncadd [#allocation5], %s1182
      %s1184 = sshll.u32 [#allocation11], 4
      %s1185 = int_to_ptr.vmem [resolvable:$true] %s1184
      %1190 = dma.vmem_to_hbm [thread:$0]  %s1185, 512, %s8, [#allocation5], 128, 128, 8
    $region53: #{tpu_custom_call.1} parent=1 // pred_fallthru
      _
    // Predicated region
    $region54: #{tpu_custom_call.1} parent=1 // pred_check
      _
    $region55: #{tpu_custom_call.1} parent=1 // pred_check_branch
      %1192 = sbr.rel (0) target = $region57
    $region56: #{tpu_custom_call.1} parent=1 // pred_region
      %1193 = dma.done [#allocation5], 512
    $region57: #{tpu_custom_call.1} parent=1 // pred_fallthru
      _
    %1194 = vsyncpa [#allocation4], 1
    %1195 = vsyncpa [#allocation7], 1
    %1196 = vsyncpa [#allocation10], 1
    %1197 = vsyncpa [#allocation5], 1

</llo_original>
